<compile_context>
chip_gen: v7x
topology: tpu7x:2x2x1
jax: 0.10.0
libtpu: 0.0.40
codegen_flags: <defaults>
</compile_context>

<pallas_src>
import functools
import math

import jax
import jax.numpy as jnp
from jax.experimental import pallas as pl
from jax.experimental.pallas import tpu as pltpu


LEAKY_SLOPE = 0.2
MASK_VALUE = -9e16
LANE = 128


# ---------------------------------------------------------------------------
# Fused kernel: both GAT layers, all heads, ELU and log_softmax in one call.
# ---------------------------------------------------------------------------
def make_fused_gat_kernel(num_classes: int, store_attention: bool,
                          use_bf16_matmul: bool):
    def mxu_dot(a, b):
        if use_bf16_matmul:
            a = a.astype(jnp.bfloat16)
            b = b.astype(jnp.bfloat16)
        return jnp.dot(a, b, preferred_element_type=jnp.float32)

    def masked_softmax(logits, conn):
        # LeakyReLU(0.2), adjacency select, numerically stable row softmax.
        e = jnp.where(logits > 0, logits, LEAKY_SLOPE * logits)
        e = jnp.where(conn, e, MASK_VALUE)
        m = jnp.max(e, axis=-1, keepdims=True)
        p = jnp.exp(e - m)
        s = jnp.sum(p, axis=-1, keepdims=True)
        inv = pl.reciprocal(s, approx=True)        # EUP slot (otherwise idle)
        inv = inv * (2.0 - s * inv)                # one Newton step -> ~f32 exact
        return p * inv

    def kernel(x_ref, adj_ref, w1_ref, s1_ref, w2_ref, a2_ref, *out_refs):
        if store_attention:
            logp_ref, attn1_ref, attn2_ref = out_refs
        else:
            (logp_ref,) = out_refs

        H, FP, CP = w2_ref.shape                   # heads, padded F1, padded C
        N = x_ref.shape[0]

        x = x_ref[...]                             # (N, FinP) f32
        # int8 adjacency -> f32 once, then a single boolean mask reused by all
        # heads and by layer 2 (no precomputed f32 additive mask in HBM).
        conn = adj_ref[...].astype(jnp.float32) > 0.0            # (N, N) bool

        # ---- layer 1: all heads' linear transforms as ONE wide MXU matmul ----
        ht_all = mxu_dot(x, w1_ref[...])           # (N, H*FP), lane-aligned slabs

        # All heads' src/tgt scores in ONE block-diagonal MXU matmul.
        scores_all = mxu_dot(ht_all, s1_ref[...])  # (N, 2H): [src_0..src_{H-1}, tgt_0..]

        # Hoist the bf16 cast of ht_all out of the head loop.
        ht_mm = ht_all.astype(jnp.bfloat16) if use_bf16_matmul else ht_all

        # ---- per-head attention + aggregation, layer-2 matmul distributed ----
        h2t = jnp.zeros((N, CP), jnp.float32)
        for h in range(H):                         # static unroll, H is tiny
            src = scores_all[:, h:h + 1]           # (N, 1)
            tgt = scores_all[:, H + h:H + h + 1]   # (N, 1)
            attn = masked_softmax(src + tgt.T, conn)            # (N, N)
            if store_attention:
                attn1_ref[h, :, :] = attn
            ht_h = ht_mm[:, h * FP:(h + 1) * FP]   # lane-aligned (N, FP) slab
            head_out = jnp.dot(attn.astype(ht_h.dtype), ht_h,
                               preferred_element_type=jnp.float32)
            # ELU (alpha=1, f32 on the VPU/EUP regardless of bf16 matmuls).
            head_elu = jnp.where(head_out > 0, head_out,
                                 jnp.exp(jnp.minimum(head_out, 0.0)) - 1.0)
            # Distribute h1 @ W2 over heads: no concat of 4-wide columns.
            h2t = h2t + mxu_dot(head_elu, w2_ref[h])            # (N, CP)

        # ---- layer 2 attention ----
        scores2 = mxu_dot(h2t, a2_ref[...])        # (N, 2): [src2 | tgt2]
        attn2 = masked_softmax(scores2[:, 0:1] + scores2[:, 1:2].T, conn)
        if store_attention:
            attn2_ref[...] = attn2
        out2 = mxu_dot(attn2, h2t)                 # (N, CP); padded cols are 0

        # ---- final log_softmax over the real classes only ----
        col = jax.lax.broadcasted_iota(jnp.int32, out2.shape, 1)
        out2m = jnp.where(col < num_classes, out2, MASK_VALUE)
        mo = jnp.max(out2m, axis=-1, keepdims=True)
        lse = jnp.log(jnp.sum(jnp.exp(out2m - mo), axis=-1, keepdims=True)) + mo
        logp_ref[...] = out2m - lse                # lane-dense (N, 128) store

    return kernel


def _full_spec(shape):
    # whole-array block (no grid): block_shape == full array dims
    return pl.BlockSpec(shape, lambda: tuple(0 for _ in shape))


def _nbytes(shape, dtype=jnp.float32):
    return math.prod(shape) * jnp.dtype(dtype).itemsize


def _round_up(v, m=LANE):
    return ((v + m - 1) // m) * m


def _pad_to(a, shape):
    pads = [(0, t - s) for s, t in zip(a.shape, shape)]
    return jnp.pad(a, pads)


def _vmem_limit_bytes(io_bytes):
    # 0.8 * physical VMEM leaves headroom for compiler scratch / double
    # buffers: ~51 MiB on v7x (64 MiB), ~102 MiB on v5e/v6e (128 MiB).
    try:
        cap = getattr(pltpu.get_tpu_info(), "vmem_capacity_bytes", 128 << 20)
    except Exception:  # pragma: no cover - non-TPU trace fallback
        cap = 128 << 20
    ceiling = int(cap * 0.8)
    return int(min(max(4 * io_bytes + (4 << 20), 16 << 20), ceiling))


# ---------------------------------------------------------------------------
# Wrapper: pads/stacks parameters to lane-dense shapes, one pallas_call.
# ---------------------------------------------------------------------------
@functools.partial(jax.jit, static_argnames=("return_attentions", "use_bf16_matmul"))
def gat_forward(x, adj, params, return_attentions=True, use_bf16_matmul=False):
    """Full GAT forward (eval mode). Returns (log_probs, attention1_list, attention2)."""
    N, Fin = x.shape
    gat1 = params["gat1"]
    H = len(gat1)
    F1 = gat1[0][0].shape[1]
    W2, a2 = params["gat2"]
    C = W2.shape[1]

    FinP = _round_up(Fin)
    FP = _round_up(F1)
    CP = _round_up(C)

    # ---- lane-pad inputs / stack parameters (all zero padding) ----
    x_pad = _pad_to(x.astype(jnp.float32), (N, FinP))                 # (N, FinP)
    adj_i8 = (adj > 0).astype(jnp.int8)                               # (N, N) int8

    # Stacked layer-1 weights: one wide matmul, each head's slab lane-aligned.
    W1_pad = jnp.concatenate(
        [_pad_to(W.astype(jnp.float32), (FinP, FP)) for (W, _) in gat1],
        axis=1)                                                       # (FinP, H*FP)

    # Block-diagonal score projection: columns [0:H] = src vectors, [H:2H] = tgt.
    S1 = jnp.zeros((H * FP, 2 * H), jnp.float32)
    for h, (_, a) in enumerate(gat1):
        S1 = S1.at[h * FP:h * FP + F1, h].set(a[:F1, 0])
        S1 = S1.at[h * FP:h * FP + F1, H + h].set(a[F1:, 0])

    # Layer-2 weight split per head (rows matching each head's output slab).
    W2_pad = jnp.zeros((H, FP, CP), jnp.float32)
    for h in range(H):
        W2_pad = W2_pad.at[h, :F1, :C].set(W2[h * F1:(h + 1) * F1, :])

    # Layer-2 score vectors as one (CP, 2) matrix: [a2_src | a2_tgt].
    a2sc = jnp.zeros((CP, 2), jnp.float32)
    a2sc = a2sc.at[:C, 0].set(a2[:C, 0])
    a2sc = a2sc.at[:C, 1].set(a2[C:, 0])

    out_shapes = [jax.ShapeDtypeStruct((N, CP), jnp.float32)]
    if return_attentions:
        # TODO(synk): for large N write these in bf16 and pad N to 128 multiples.
        out_shapes += [
            jax.ShapeDtypeStruct((H, N, N), jnp.float32),
            jax.ShapeDtypeStruct((N, N), jnp.float32),
        ]

    in_arrays = (x_pad, adj_i8, W1_pad, S1, W2_pad, a2sc)
    in_specs = [_full_spec(a.shape) for a in in_arrays]
    out_specs = tuple(_full_spec(s.shape) for s in out_shapes)

    io_bytes = sum(_nbytes(a.shape, a.dtype) for a in in_arrays)
    io_bytes += sum(_nbytes(s.shape, s.dtype) for s in out_shapes)

    outs = pl.pallas_call(
        make_fused_gat_kernel(C, return_attentions, use_bf16_matmul),
        out_shape=tuple(out_shapes),
        in_specs=in_specs,
        out_specs=out_specs,
        compiler_params=pltpu.CompilerParams(
            vmem_limit_bytes=_vmem_limit_bytes(io_bytes)),
    )(*in_arrays)

    if return_attentions:
        logp_pad, attn1, attn2 = outs
        return logp_pad[:, :C], [attn1[h] for h in range(H)], attn2
    (logp_pad,) = outs
    return logp_pad[:, :C], None, None


# ---------------------------------------------------------------------------
# Pure-JAX reference (mirrors the PyTorch module in eval mode).
# ---------------------------------------------------------------------------
def gat_reference(x, adj, params):
    def layer(h, W, a):
        ht = h @ W
        F = W.shape[1]
        src = ht @ a[:F, :]
        tgt = ht @ a[F:, :]
        e = src + tgt.T
        e = jnp.where(e > 0, e, LEAKY_SLOPE * e)
        e = jnp.where(adj > 0, e, MASK_VALUE)
        attn = jax.nn.softmax(e, axis=-1)
        return attn @ ht, attn

    outs, attns1 = [], []
    for (W, a) in params["gat1"]:
        o, at = layer(x, W, a)
        outs.append(o)
        attns1.append(at)
    h1 = jax.nn.elu(jnp.concatenate(outs, axis=1))
    W2, a2 = params["gat2"]
    h2, attn2 = layer(h1, W2, a2)
    return jax.nn.log_softmax(h2, axis=1), attns1, attn2


# ---------------------------------------------------------------------------
# Parameter init (matches nn.init.xavier_normal_ on the PyTorch module).
# ---------------------------------------------------------------------------
def xavier_normal(key, shape):
    fan_in, fan_out = shape[0], shape[1]
    std = jnp.sqrt(2.0 / (fan_in + fan_out))
    return std * jax.random.normal(key, shape, dtype=jnp.float32)


def init_gat_params(key, in_features, hidden_features, num_classes, n_heads):
    n_hidden = hidden_features // n_heads
    keys = jax.random.split(key, 2 * n_heads + 2)
    gat1 = []
    for i in range(n_heads):
        W = xavier_normal(keys[2 * i], (in_features, n_hidden))
        a = xavier_normal(keys[2 * i + 1], (2 * n_hidden, 1))
        gat1.append((W, a))
    W2 = xavier_normal(keys[-2], (hidden_features, num_classes))
    a2 = xavier_normal(keys[-1], (2 * num_classes, 1))
    return {"gat1": gat1, "gat2": (W2, a2)}


if __name__ == "__main__":
    # Small synthetic graph (deterministic).
    N = 16               # number of nodes
    in_features = 8
    hidden_features = 16
    num_classes = 4
    n_heads = 4

    key = jax.random.PRNGKey(0)
    k_x, k_adj, k_params = jax.random.split(key, 3)

    x = jax.random.normal(k_x, (N, in_features), dtype=jnp.float32)

    # Random sparse adjacency with self-loops (values > 0 are edges).
    adj_rand = (jax.random.uniform(k_adj, (N, N)) < 0.3).astype(jnp.float32)
    adj = jnp.maximum(adj_rand, jnp.eye(N, dtype=jnp.float32))

    params = init_gat_params(
        k_params, in_features, hidden_features, num_classes, n_heads
    )

    # Full forward (with attention maps, as in the PyTorch module).
    log_probs, att1, att2 = gat_forward(x, adj, params)
    jax.block_until_ready(log_probs)
    jax.block_until_ready(att2)

    # Attention-free fast path (drops all N*N output stores).
    log_probs_fast, _, _ = gat_forward(x, adj, params, return_attentions=False)
    jax.block_until_ready(log_probs_fast)

    # Shape / sanity checks.
    assert log_probs.shape == (N, num_classes)
    assert att2.shape == (N, N)
    assert len(att1) == n_heads and att1[0].shape == (N, N)
    assert bool(jnp.all(jnp.isfinite(log_probs)))
    assert bool(jnp.allclose(jnp.sum(att2, axis=-1), 1.0, atol=1e-3))
    assert bool(jnp.allclose(jnp.sum(att1[0], axis=-1), 1.0, atol=1e-3))
    assert bool(jnp.allclose(jnp.sum(jnp.exp(log_probs), axis=-1), 1.0, atol=1e-3))
    assert bool(jnp.allclose(log_probs, log_probs_fast, atol=1e-5, rtol=1e-5))

    # Numerical parity against the pure-JAX reference of the PyTorch module.
    ref_logp, ref_att1, ref_att2 = gat_reference(x, adj, params)
    assert bool(jnp.allclose(log_probs, ref_logp, atol=1e-4, rtol=1e-4))
    assert bool(jnp.allclose(att2, ref_att2, atol=1e-4, rtol=1e-4))
    for h in range(n_heads):
        assert bool(jnp.allclose(att1[h], ref_att1[h], atol=1e-4, rtol=1e-4))

    print("KERNEL_OK")
</pallas_src>

<mosaic_0001>
module attributes {stable_mosaic.version = 11 : i64} {
  func.func @kernel(%arg0: memref<16x128xf32, #tpu.memory_space<vmem>>, %arg1: memref<16x16xi8, #tpu.memory_space<vmem>>, %arg2: memref<128x512xf32, #tpu.memory_space<vmem>>, %arg3: memref<512x8xf32, #tpu.memory_space<vmem>>, %arg4: memref<4x128x128xf32, #tpu.memory_space<vmem>>, %arg5: memref<128x2xf32, #tpu.memory_space<vmem>>, %arg6: memref<16x128xf32, #tpu.memory_space<vmem>>, %arg7: memref<4x16x16xf32, #tpu.memory_space<vmem>>, %arg8: memref<16x16xf32, #tpu.memory_space<vmem>>) attributes {dimension_semantics = [], scalar_prefetch = 0 : i64, scratch_operands = 0 : i64, tpu.core_type = #tpu.core_type<tc>} {
    %c0 = arith.constant 0 : index
    %c0_0 = arith.constant 0 : index
    %0 = vector.load %arg0[%c0, %c0_0] : memref<16x128xf32, #tpu.memory_space<vmem>>, vector<16x128xf32>
    %c0_1 = arith.constant 0 : index
    %c0_2 = arith.constant 0 : index
    %1 = vector.load %arg1[%c0_1, %c0_2] : memref<16x16xi8, #tpu.memory_space<vmem>>, vector<16x16xi8>
    %2 = arith.sitofp %1 : vector<16x16xi8> to vector<16x16xf32>
    %cst = arith.constant 0.000000e+00 : f32
    %3 = vector.broadcast %cst : f32 to vector<16x16xf32>
    %4 = arith.cmpf ogt, %2, %3 : vector<16x16xf32>
    %c0_3 = arith.constant 0 : index
    %c0_4 = arith.constant 0 : index
    %5 = vector.load %arg2[%c0_3, %c0_4] : memref<128x512xf32, #tpu.memory_space<vmem>>, vector<128x512xf32>
    %cst_5 = arith.constant dense<0.000000e+00> : vector<16x512xf32>
    %6 = tpu.matmul %0, %5, %cst_5 {dimension_numbers = #tpu.dot_dimension_numbers<[1], [0], [0], [1], [0, 0, 1, 1], [], []>} : vector<16x128xf32>, vector<128x512xf32>, vector<16x512xf32> -> vector<16x512xf32>
    %c0_6 = arith.constant 0 : index
    %c0_7 = arith.constant 0 : index
    %7 = vector.load %arg3[%c0_6, %c0_7] : memref<512x8xf32, #tpu.memory_space<vmem>>, vector<512x8xf32>
    %cst_8 = arith.constant dense<0.000000e+00> : vector<16x8xf32>
    %8 = tpu.matmul %6, %7, %cst_8 {dimension_numbers = #tpu.dot_dimension_numbers<[1], [0], [0], [1], [0, 0, 1, 1], [], []>} : vector<16x512xf32>, vector<512x8xf32>, vector<16x8xf32> -> vector<16x8xf32>
    %cst_9 = arith.constant 0.000000e+00 : f32
    %9 = vector.broadcast %cst_9 : f32 to vector<16x128xf32>
    %10 = vector.extract_strided_slice %8 {offsets = [0, 0], sizes = [16, 1], strides = [1, 1]} : vector<16x8xf32> to vector<16x1xf32>
    %11 = vector.extract_strided_slice %8 {offsets = [0, 4], sizes = [16, 1], strides = [1, 1]} : vector<16x8xf32> to vector<16x1xf32>
    %12 = tpu.transpose %11, [1, 0] : vector<16x1xf32> -> vector<1x16xf32>
    %13 = vector.broadcast %10 : vector<16x1xf32> to vector<16x16xf32>
    %14 = vector.broadcast %12 : vector<1x16xf32> to vector<16x16xf32>
    %15 = arith.addf %13, %14 : vector<16x16xf32>
    %cst_10 = arith.constant 0.000000e+00 : f32
    %16 = vector.broadcast %cst_10 : f32 to vector<16x16xf32>
    %17 = arith.cmpf ogt, %15, %16 : vector<16x16xf32>
    %cst_11 = arith.constant 2.000000e-01 : f32
    %18 = vector.broadcast %cst_11 : f32 to vector<16x16xf32>
    %19 = arith.mulf %18, %15 : vector<16x16xf32>
    %20 = arith.select %17, %15, %19 : vector<16x16xi1>, vector<16x16xf32>
    %cst_12 = arith.constant -9.000000e+16 : f32
    %21 = vector.broadcast %cst_12 : f32 to vector<16x16xf32>
    %22 = arith.select %4, %20, %21 : vector<16x16xi1>, vector<16x16xf32>
    %cst_13 = arith.constant dense<0xFF800000> : vector<16xf32>
    %23 = vector.multi_reduction <maximumf>, %22, %cst_13 [1] : vector<16x16xf32> to vector<16xf32>
    %24 = vector.shape_cast %23 : vector<16xf32> to vector<16x1xf32>
    %25 = vector.broadcast %24 : vector<16x1xf32> to vector<16x16xf32>
    %26 = arith.subf %22, %25 : vector<16x16xf32>
    %27 = math.exp %26 : vector<16x16xf32>
    %cst_14 = arith.constant dense<0.000000e+00> : vector<16xf32>
    %28 = vector.multi_reduction <add>, %27, %cst_14 [1] : vector<16x16xf32> to vector<16xf32>
    %29 = vector.shape_cast %28 : vector<16xf32> to vector<16x1xf32>
    %30 = tpu.reciprocal %29 {approx = true} : vector<16x1xf32> -> vector<16x1xf32>
    %31 = arith.mulf %29, %30 : vector<16x1xf32>
    %cst_15 = arith.constant 2.000000e+00 : f32
    %32 = vector.broadcast %cst_15 : f32 to vector<16x1xf32>
    %33 = arith.subf %32, %31 : vector<16x1xf32>
    %34 = arith.mulf %30, %33 : vector<16x1xf32>
    %35 = vector.broadcast %34 : vector<16x1xf32> to vector<16x16xf32>
    %36 = arith.mulf %27, %35 : vector<16x16xf32>
    %c0_16 = arith.constant 0 : index
    %c0_17 = arith.constant 0 : index
    %c0_18 = arith.constant 0 : index
    %37 = vector.load %arg7[%c0_16, %c0_17, %c0_18] : memref<4x16x16xf32, #tpu.memory_space<vmem>>, vector<1x16x16xf32>
    %38 = vector.shape_cast %37 : vector<1x16x16xf32> to vector<16x16xf32>
    %39 = vector.shape_cast %36 : vector<16x16xf32> to vector<1x16x16xf32>
    tpu.vector_store %arg7[%c0_16, %c0_17, %c0_18], %39 {strides = array<i32>} : memref<4x16x16xf32, #tpu.memory_space<vmem>>, vector<1x16x16xf32>,
    %40 = vector.extract_strided_slice %6 {offsets = [0, 0], sizes = [16, 128], strides = [1, 1]} : vector<16x512xf32> to vector<16x128xf32>
    %cst_19 = arith.constant dense<0.000000e+00> : vector<16x128xf32>
    %41 = tpu.matmul %36, %40, %cst_19 {dimension_numbers = #tpu.dot_dimension_numbers<[1], [0], [0], [1], [0, 0, 1, 1], [], []>} : vector<16x16xf32>, vector<16x128xf32>, vector<16x128xf32> -> vector<16x128xf32>
    %cst_20 = arith.constant 0.000000e+00 : f32
    %42 = vector.broadcast %cst_20 : f32 to vector<16x128xf32>
    %43 = arith.cmpf ogt, %41, %42 : vector<16x128xf32>
    %cst_21 = arith.constant 0.000000e+00 : f32
    %44 = vector.broadcast %cst_21 : f32 to vector<16x128xf32>
    %45 = arith.minimumf %41, %44 : vector<16x128xf32>
    %46 = math.exp %45 : vector<16x128xf32>
    %cst_22 = arith.constant 1.000000e+00 : f32
    %47 = vector.broadcast %cst_22 : f32 to vector<16x128xf32>
    %48 = arith.subf %46, %47 : vector<16x128xf32>
    %49 = arith.select %43, %41, %48 : vector<16x128xi1>, vector<16x128xf32>
    %c0_23 = arith.constant 0 : index
    %c0_24 = arith.constant 0 : index
    %c0_25 = arith.constant 0 : index
    %50 = vector.load %arg4[%c0_23, %c0_24, %c0_25] : memref<4x128x128xf32, #tpu.memory_space<vmem>>, vector<1x128x128xf32>
    %51 = vector.shape_cast %50 : vector<1x128x128xf32> to vector<128x128xf32>
    %cst_26 = arith.constant dense<0.000000e+00> : vector<16x128xf32>
    %52 = tpu.matmul %49, %51, %cst_26 {dimension_numbers = #tpu.dot_dimension_numbers<[1], [0], [0], [1], [0, 0, 1, 1], [], []>} : vector<16x128xf32>, vector<128x128xf32>, vector<16x128xf32> -> vector<16x128xf32>
    %53 = arith.addf %9, %52 : vector<16x128xf32>
    %54 = vector.extract_strided_slice %8 {offsets = [0, 1], sizes = [16, 1], strides = [1, 1]} : vector<16x8xf32> to vector<16x1xf32>
    %55 = vector.extract_strided_slice %8 {offsets = [0, 5], sizes = [16, 1], strides = [1, 1]} : vector<16x8xf32> to vector<16x1xf32>
    %56 = tpu.transpose %55, [1, 0] : vector<16x1xf32> -> vector<1x16xf32>
    %57 = vector.broadcast %54 : vector<16x1xf32> to vector<16x16xf32>
    %58 = vector.broadcast %56 : vector<1x16xf32> to vector<16x16xf32>
    %59 = arith.addf %57, %58 : vector<16x16xf32>
    %cst_27 = arith.constant 0.000000e+00 : f32
    %60 = vector.broadcast %cst_27 : f32 to vector<16x16xf32>
    %61 = arith.cmpf ogt, %59, %60 : vector<16x16xf32>
    %cst_28 = arith.constant 2.000000e-01 : f32
    %62 = vector.broadcast %cst_28 : f32 to vector<16x16xf32>
    %63 = arith.mulf %62, %59 : vector<16x16xf32>
    %64 = arith.select %61, %59, %63 : vector<16x16xi1>, vector<16x16xf32>
    %cst_29 = arith.constant -9.000000e+16 : f32
    %65 = vector.broadcast %cst_29 : f32 to vector<16x16xf32>
    %66 = arith.select %4, %64, %65 : vector<16x16xi1>, vector<16x16xf32>
    %cst_30 = arith.constant dense<0xFF800000> : vector<16xf32>
    %67 = vector.multi_reduction <maximumf>, %66, %cst_30 [1] : vector<16x16xf32> to vector<16xf32>
    %68 = vector.shape_cast %67 : vector<16xf32> to vector<16x1xf32>
    %69 = vector.broadcast %68 : vector<16x1xf32> to vector<16x16xf32>
    %70 = arith.subf %66, %69 : vector<16x16xf32>
    %71 = math.exp %70 : vector<16x16xf32>
    %cst_31 = arith.constant dense<0.000000e+00> : vector<16xf32>
    %72 = vector.multi_reduction <add>, %71, %cst_31 [1] : vector<16x16xf32> to vector<16xf32>
    %73 = vector.shape_cast %72 : vector<16xf32> to vector<16x1xf32>
    %74 = tpu.reciprocal %73 {approx = true} : vector<16x1xf32> -> vector<16x1xf32>
    %75 = arith.mulf %73, %74 : vector<16x1xf32>
    %cst_32 = arith.constant 2.000000e+00 : f32
    %76 = vector.broadcast %cst_32 : f32 to vector<16x1xf32>
    %77 = arith.subf %76, %75 : vector<16x1xf32>
    %78 = arith.mulf %74, %77 : vector<16x1xf32>
    %79 = vector.broadcast %78 : vector<16x1xf32> to vector<16x16xf32>
    %80 = arith.mulf %71, %79 : vector<16x16xf32>
    %c1 = arith.constant 1 : index
    %c0_33 = arith.constant 0 : index
    %c0_34 = arith.constant 0 : index
    %81 = vector.load %arg7[%c1, %c0_33, %c0_34] : memref<4x16x16xf32, #tpu.memory_space<vmem>>, vector<1x16x16xf32>
    %82 = vector.shape_cast %81 : vector<1x16x16xf32> to vector<16x16xf32>
    %83 = vector.shape_cast %80 : vector<16x16xf32> to vector<1x16x16xf32>
    tpu.vector_store %arg7[%c1, %c0_33, %c0_34], %83 {strides = array<i32>} : memref<4x16x16xf32, #tpu.memory_space<vmem>>, vector<1x16x16xf32>,
    %84 = vector.extract_strided_slice %6 {offsets = [0, 128], sizes = [16, 128], strides = [1, 1]} : vector<16x512xf32> to vector<16x128xf32>
    %cst_35 = arith.constant dense<0.000000e+00> : vector<16x128xf32>
    %85 = tpu.matmul %80, %84, %cst_35 {dimension_numbers = #tpu.dot_dimension_numbers<[1], [0], [0], [1], [0, 0, 1, 1], [], []>} : vector<16x16xf32>, vector<16x128xf32>, vector<16x128xf32> -> vector<16x128xf32>
    %cst_36 = arith.constant 0.000000e+00 : f32
    %86 = vector.broadcast %cst_36 : f32 to vector<16x128xf32>
    %87 = arith.cmpf ogt, %85, %86 : vector<16x128xf32>
    %cst_37 = arith.constant 0.000000e+00 : f32
    %88 = vector.broadcast %cst_37 : f32 to vector<16x128xf32>
    %89 = arith.minimumf %85, %88 : vector<16x128xf32>
    %90 = math.exp %89 : vector<16x128xf32>
    %cst_38 = arith.constant 1.000000e+00 : f32
    %91 = vector.broadcast %cst_38 : f32 to vector<16x128xf32>
    %92 = arith.subf %90, %91 : vector<16x128xf32>
    %93 = arith.select %87, %85, %92 : vector<16x128xi1>, vector<16x128xf32>
    %c1_39 = arith.constant 1 : index
    %c0_40 = arith.constant 0 : index
    %c0_41 = arith.constant 0 : index
    %94 = vector.load %arg4[%c1_39, %c0_40, %c0_41] : memref<4x128x128xf32, #tpu.memory_space<vmem>>, vector<1x128x128xf32>
    %95 = vector.shape_cast %94 : vector<1x128x128xf32> to vector<128x128xf32>
    %cst_42 = arith.constant dense<0.000000e+00> : vector<16x128xf32>
    %96 = tpu.matmul %93, %95, %cst_42 {dimension_numbers = #tpu.dot_dimension_numbers<[1], [0], [0], [1], [0, 0, 1, 1], [], []>} : vector<16x128xf32>, vector<128x128xf32>, vector<16x128xf32> -> vector<16x128xf32>
    %97 = arith.addf %53, %96 : vector<16x128xf32>
    %98 = vector.extract_strided_slice %8 {offsets = [0, 2], sizes = [16, 1], strides = [1, 1]} : vector<16x8xf32> to vector<16x1xf32>
    %99 = vector.extract_strided_slice %8 {offsets = [0, 6], sizes = [16, 1], strides = [1, 1]} : vector<16x8xf32> to vector<16x1xf32>
    %100 = tpu.transpose %99, [1, 0] : vector<16x1xf32> -> vector<1x16xf32>
    %101 = vector.broadcast %98 : vector<16x1xf32> to vector<16x16xf32>
    %102 = vector.broadcast %100 : vector<1x16xf32> to vector<16x16xf32>
    %103 = arith.addf %101, %102 : vector<16x16xf32>
    %cst_43 = arith.constant 0.000000e+00 : f32
    %104 = vector.broadcast %cst_43 : f32 to vector<16x16xf32>
    %105 = arith.cmpf ogt, %103, %104 : vector<16x16xf32>
    %cst_44 = arith.constant 2.000000e-01 : f32
    %106 = vector.broadcast %cst_44 : f32 to vector<16x16xf32>
    %107 = arith.mulf %106, %103 : vector<16x16xf32>
    %108 = arith.select %105, %103, %107 : vector<16x16xi1>, vector<16x16xf32>
    %cst_45 = arith.constant -9.000000e+16 : f32
    %109 = vector.broadcast %cst_45 : f32 to vector<16x16xf32>
    %110 = arith.select %4, %108, %109 : vector<16x16xi1>, vector<16x16xf32>
    %cst_46 = arith.constant dense<0xFF800000> : vector<16xf32>
    %111 = vector.multi_reduction <maximumf>, %110, %cst_46 [1] : vector<16x16xf32> to vector<16xf32>
    %112 = vector.shape_cast %111 : vector<16xf32> to vector<16x1xf32>
    %113 = vector.broadcast %112 : vector<16x1xf32> to vector<16x16xf32>
    %114 = arith.subf %110, %113 : vector<16x16xf32>
    %115 = math.exp %114 : vector<16x16xf32>
    %cst_47 = arith.constant dense<0.000000e+00> : vector<16xf32>
    %116 = vector.multi_reduction <add>, %115, %cst_47 [1] : vector<16x16xf32> to vector<16xf32>
    %117 = vector.shape_cast %116 : vector<16xf32> to vector<16x1xf32>
    %118 = tpu.reciprocal %117 {approx = true} : vector<16x1xf32> -> vector<16x1xf32>
    %119 = arith.mulf %117, %118 : vector<16x1xf32>
    %cst_48 = arith.constant 2.000000e+00 : f32
    %120 = vector.broadcast %cst_48 : f32 to vector<16x1xf32>
    %121 = arith.subf %120, %119 : vector<16x1xf32>
    %122 = arith.mulf %118, %121 : vector<16x1xf32>
    %123 = vector.broadcast %122 : vector<16x1xf32> to vector<16x16xf32>
    %124 = arith.mulf %115, %123 : vector<16x16xf32>
    %c2 = arith.constant 2 : index
    %c0_49 = arith.constant 0 : index
    %c0_50 = arith.constant 0 : index
    %125 = vector.load %arg7[%c2, %c0_49, %c0_50] : memref<4x16x16xf32, #tpu.memory_space<vmem>>, vector<1x16x16xf32>
    %126 = vector.shape_cast %125 : vector<1x16x16xf32> to vector<16x16xf32>
    %127 = vector.shape_cast %124 : vector<16x16xf32> to vector<1x16x16xf32>
    tpu.vector_store %arg7[%c2, %c0_49, %c0_50], %127 {strides = array<i32>} : memref<4x16x16xf32, #tpu.memory_space<vmem>>, vector<1x16x16xf32>,
    %128 = vector.extract_strided_slice %6 {offsets = [0, 256], sizes = [16, 128], strides = [1, 1]} : vector<16x512xf32> to vector<16x128xf32>
    %cst_51 = arith.constant dense<0.000000e+00> : vector<16x128xf32>
    %129 = tpu.matmul %124, %128, %cst_51 {dimension_numbers = #tpu.dot_dimension_numbers<[1], [0], [0], [1], [0, 0, 1, 1], [], []>} : vector<16x16xf32>, vector<16x128xf32>, vector<16x128xf32> -> vector<16x128xf32>
    %cst_52 = arith.constant 0.000000e+00 : f32
    %130 = vector.broadcast %cst_52 : f32 to vector<16x128xf32>
    %131 = arith.cmpf ogt, %129, %130 : vector<16x128xf32>
    %cst_53 = arith.constant 0.000000e+00 : f32
    %132 = vector.broadcast %cst_53 : f32 to vector<16x128xf32>
    %133 = arith.minimumf %129, %132 : vector<16x128xf32>
    %134 = math.exp %133 : vector<16x128xf32>
    %cst_54 = arith.constant 1.000000e+00 : f32
    %135 = vector.broadcast %cst_54 : f32 to vector<16x128xf32>
    %136 = arith.subf %134, %135 : vector<16x128xf32>
    %137 = arith.select %131, %129, %136 : vector<16x128xi1>, vector<16x128xf32>
    %c2_55 = arith.constant 2 : index
    %c0_56 = arith.constant 0 : index
    %c0_57 = arith.constant 0 : index
    %138 = vector.load %arg4[%c2_55, %c0_56, %c0_57] : memref<4x128x128xf32, #tpu.memory_space<vmem>>, vector<1x128x128xf32>
    %139 = vector.shape_cast %138 : vector<1x128x128xf32> to vector<128x128xf32>
    %cst_58 = arith.constant dense<0.000000e+00> : vector<16x128xf32>
    %140 = tpu.matmul %137, %139, %cst_58 {dimension_numbers = #tpu.dot_dimension_numbers<[1], [0], [0], [1], [0, 0, 1, 1], [], []>} : vector<16x128xf32>, vector<128x128xf32>, vector<16x128xf32> -> vector<16x128xf32>
    %141 = arith.addf %97, %140 : vector<16x128xf32>
    %142 = vector.extract_strided_slice %8 {offsets = [0, 3], sizes = [16, 1], strides = [1, 1]} : vector<16x8xf32> to vector<16x1xf32>
    %143 = vector.extract_strided_slice %8 {offsets = [0, 7], sizes = [16, 1], strides = [1, 1]} : vector<16x8xf32> to vector<16x1xf32>
    %144 = tpu.transpose %143, [1, 0] : vector<16x1xf32> -> vector<1x16xf32>
    %145 = vector.broadcast %142 : vector<16x1xf32> to vector<16x16xf32>
    %146 = vector.broadcast %144 : vector<1x16xf32> to vector<16x16xf32>
    %147 = arith.addf %145, %146 : vector<16x16xf32>
    %cst_59 = arith.constant 0.000000e+00 : f32
    %148 = vector.broadcast %cst_59 : f32 to vector<16x16xf32>
    %149 = arith.cmpf ogt, %147, %148 : vector<16x16xf32>
    %cst_60 = arith.constant 2.000000e-01 : f32
    %150 = vector.broadcast %cst_60 : f32 to vector<16x16xf32>
    %151 = arith.mulf %150, %147 : vector<16x16xf32>
    %152 = arith.select %149, %147, %151 : vector<16x16xi1>, vector<16x16xf32>
    %cst_61 = arith.constant -9.000000e+16 : f32
    %153 = vector.broadcast %cst_61 : f32 to vector<16x16xf32>
    %154 = arith.select %4, %152, %153 : vector<16x16xi1>, vector<16x16xf32>
    %cst_62 = arith.constant dense<0xFF800000> : vector<16xf32>
    %155 = vector.multi_reduction <maximumf>, %154, %cst_62 [1] : vector<16x16xf32> to vector<16xf32>
    %156 = vector.shape_cast %155 : vector<16xf32> to vector<16x1xf32>
    %157 = vector.broadcast %156 : vector<16x1xf32> to vector<16x16xf32>
    %158 = arith.subf %154, %157 : vector<16x16xf32>
    %159 = math.exp %158 : vector<16x16xf32>
    %cst_63 = arith.constant dense<0.000000e+00> : vector<16xf32>
    %160 = vector.multi_reduction <add>, %159, %cst_63 [1] : vector<16x16xf32> to vector<16xf32>
    %161 = vector.shape_cast %160 : vector<16xf32> to vector<16x1xf32>
    %162 = tpu.reciprocal %161 {approx = true} : vector<16x1xf32> -> vector<16x1xf32>
    %163 = arith.mulf %161, %162 : vector<16x1xf32>
    %cst_64 = arith.constant 2.000000e+00 : f32
    %164 = vector.broadcast %cst_64 : f32 to vector<16x1xf32>
    %165 = arith.subf %164, %163 : vector<16x1xf32>
    %166 = arith.mulf %162, %165 : vector<16x1xf32>
    %167 = vector.broadcast %166 : vector<16x1xf32> to vector<16x16xf32>
    %168 = arith.mulf %159, %167 : vector<16x16xf32>
    %c3 = arith.constant 3 : index
    %c0_65 = arith.constant 0 : index
    %c0_66 = arith.constant 0 : index
    %169 = vector.load %arg7[%c3, %c0_65, %c0_66] : memref<4x16x16xf32, #tpu.memory_space<vmem>>, vector<1x16x16xf32>
    %170 = vector.shape_cast %169 : vector<1x16x16xf32> to vector<16x16xf32>
    %171 = vector.shape_cast %168 : vector<16x16xf32> to vector<1x16x16xf32>
    tpu.vector_store %arg7[%c3, %c0_65, %c0_66], %171 {strides = array<i32>} : memref<4x16x16xf32, #tpu.memory_space<vmem>>, vector<1x16x16xf32>,
    %172 = vector.extract_strided_slice %6 {offsets = [0, 384], sizes = [16, 128], strides = [1, 1]} : vector<16x512xf32> to vector<16x128xf32>
    %cst_67 = arith.constant dense<0.000000e+00> : vector<16x128xf32>
    %173 = tpu.matmul %168, %172, %cst_67 {dimension_numbers = #tpu.dot_dimension_numbers<[1], [0], [0], [1], [0, 0, 1, 1], [], []>} : vector<16x16xf32>, vector<16x128xf32>, vector<16x128xf32> -> vector<16x128xf32>
    %cst_68 = arith.constant 0.000000e+00 : f32
    %174 = vector.broadcast %cst_68 : f32 to vector<16x128xf32>
    %175 = arith.cmpf ogt, %173, %174 : vector<16x128xf32>
    %cst_69 = arith.constant 0.000000e+00 : f32
    %176 = vector.broadcast %cst_69 : f32 to vector<16x128xf32>
    %177 = arith.minimumf %173, %176 : vector<16x128xf32>
    %178 = math.exp %177 : vector<16x128xf32>
    %cst_70 = arith.constant 1.000000e+00 : f32
    %179 = vector.broadcast %cst_70 : f32 to vector<16x128xf32>
    %180 = arith.subf %178, %179 : vector<16x128xf32>
    %181 = arith.select %175, %173, %180 : vector<16x128xi1>, vector<16x128xf32>
    %c3_71 = arith.constant 3 : index
    %c0_72 = arith.constant 0 : index
    %c0_73 = arith.constant 0 : index
    %182 = vector.load %arg4[%c3_71, %c0_72, %c0_73] : memref<4x128x128xf32, #tpu.memory_space<vmem>>, vector<1x128x128xf32>
    %183 = vector.shape_cast %182 : vector<1x128x128xf32> to vector<128x128xf32>
    %cst_74 = arith.constant dense<0.000000e+00> : vector<16x128xf32>
    %184 = tpu.matmul %181, %183, %cst_74 {dimension_numbers = #tpu.dot_dimension_numbers<[1], [0], [0], [1], [0, 0, 1, 1], [], []>} : vector<16x128xf32>, vector<128x128xf32>, vector<16x128xf32> -> vector<16x128xf32>
    %185 = arith.addf %141, %184 : vector<16x128xf32>
    %c0_75 = arith.constant 0 : index
    %c0_76 = arith.constant 0 : index
    %186 = vector.load %arg5[%c0_75, %c0_76] : memref<128x2xf32, #tpu.memory_space<vmem>>, vector<128x2xf32>
    %cst_77 = arith.constant dense<0.000000e+00> : vector<16x2xf32>
    %187 = tpu.matmul %185, %186, %cst_77 {dimension_numbers = #tpu.dot_dimension_numbers<[1], [0], [0], [1], [0, 0, 1, 1], [], []>} : vector<16x128xf32>, vector<128x2xf32>, vector<16x2xf32> -> vector<16x2xf32>
    %188 = vector.extract_strided_slice %187 {offsets = [0, 0], sizes = [16, 1], strides = [1, 1]} : vector<16x2xf32> to vector<16x1xf32>
    %189 = vector.extract_strided_slice %187 {offsets = [0, 1], sizes = [16, 1], strides = [1, 1]} : vector<16x2xf32> to vector<16x1xf32>
    %190 = tpu.transpose %189, [1, 0] : vector<16x1xf32> -> vector<1x16xf32>
    %191 = vector.broadcast %188 : vector<16x1xf32> to vector<16x16xf32>
    %192 = vector.broadcast %190 : vector<1x16xf32> to vector<16x16xf32>
    %193 = arith.addf %191, %192 : vector<16x16xf32>
    %cst_78 = arith.constant 0.000000e+00 : f32
    %194 = vector.broadcast %cst_78 : f32 to vector<16x16xf32>
    %195 = arith.cmpf ogt, %193, %194 : vector<16x16xf32>
    %cst_79 = arith.constant 2.000000e-01 : f32
    %196 = vector.broadcast %cst_79 : f32 to vector<16x16xf32>
    %197 = arith.mulf %196, %193 : vector<16x16xf32>
    %198 = arith.select %195, %193, %197 : vector<16x16xi1>, vector<16x16xf32>
    %cst_80 = arith.constant -9.000000e+16 : f32
    %199 = vector.broadcast %cst_80 : f32 to vector<16x16xf32>
    %200 = arith.select %4, %198, %199 : vector<16x16xi1>, vector<16x16xf32>
    %cst_81 = arith.constant dense<0xFF800000> : vector<16xf32>
    %201 = vector.multi_reduction <maximumf>, %200, %cst_81 [1] : vector<16x16xf32> to vector<16xf32>
    %202 = vector.shape_cast %201 : vector<16xf32> to vector<16x1xf32>
    %203 = vector.broadcast %202 : vector<16x1xf32> to vector<16x16xf32>
    %204 = arith.subf %200, %203 : vector<16x16xf32>
    %205 = math.exp %204 : vector<16x16xf32>
    %cst_82 = arith.constant dense<0.000000e+00> : vector<16xf32>
    %206 = vector.multi_reduction <add>, %205, %cst_82 [1] : vector<16x16xf32> to vector<16xf32>
    %207 = vector.shape_cast %206 : vector<16xf32> to vector<16x1xf32>
    %208 = tpu.reciprocal %207 {approx = true} : vector<16x1xf32> -> vector<16x1xf32>
    %209 = arith.mulf %207, %208 : vector<16x1xf32>
    %cst_83 = arith.constant 2.000000e+00 : f32
    %210 = vector.broadcast %cst_83 : f32 to vector<16x1xf32>
    %211 = arith.subf %210, %209 : vector<16x1xf32>
    %212 = arith.mulf %208, %211 : vector<16x1xf32>
    %213 = vector.broadcast %212 : vector<16x1xf32> to vector<16x16xf32>
    %214 = arith.mulf %205, %213 : vector<16x16xf32>
    %c0_84 = arith.constant 0 : index
    %c0_85 = arith.constant 0 : index
    %215 = vector.load %arg8[%c0_84, %c0_85] : memref<16x16xf32, #tpu.memory_space<vmem>>, vector<16x16xf32>
    tpu.vector_store %arg8[%c0_84, %c0_85], %214 {strides = array<i32>} : memref<16x16xf32, #tpu.memory_space<vmem>>, vector<16x16xf32>,
    %cst_86 = arith.constant dense<0.000000e+00> : vector<16x128xf32>
    %216 = tpu.matmul %214, %185, %cst_86 {dimension_numbers = #tpu.dot_dimension_numbers<[1], [0], [0], [1], [0, 0, 1, 1], [], []>} : vector<16x16xf32>, vector<16x128xf32>, vector<16x128xf32> -> vector<16x128xf32>
    %217 = tpu.iota {dimensions = array<i32: 1>} : vector<16x128xi32>
    %c4_i32 = arith.constant 4 : i32
    %218 = vector.broadcast %c4_i32 : i32 to vector<16x128xi32>
    %219 = arith.cmpi slt, %217, %218 : vector<16x128xi32>
    %cst_87 = arith.constant -9.000000e+16 : f32
    %220 = vector.broadcast %cst_87 : f32 to vector<16x128xf32>
    %221 = arith.select %219, %216, %220 : vector<16x128xi1>, vector<16x128xf32>
    %cst_88 = arith.constant dense<0xFF800000> : vector<16xf32>
    %222 = vector.multi_reduction <maximumf>, %221, %cst_88 [1] : vector<16x128xf32> to vector<16xf32>
    %223 = vector.shape_cast %222 : vector<16xf32> to vector<16x1xf32>
    %224 = vector.broadcast %223 : vector<16x1xf32> to vector<16x128xf32>
    %225 = arith.subf %221, %224 : vector<16x128xf32>
    %226 = math.exp %225 : vector<16x128xf32>
    %cst_89 = arith.constant dense<0.000000e+00> : vector<16xf32>
    %227 = vector.multi_reduction <add>, %226, %cst_89 [1] : vector<16x128xf32> to vector<16xf32>
    %228 = vector.shape_cast %227 : vector<16xf32> to vector<16x1xf32>
    %229 = math.log %228 : vector<16x1xf32>
    %230 = arith.addf %229, %223 : vector<16x1xf32>
    %231 = vector.broadcast %230 : vector<16x1xf32> to vector<16x128xf32>
    %232 = arith.subf %221, %231 : vector<16x128xf32>
    %c0_90 = arith.constant 0 : index
    %c0_91 = arith.constant 0 : index
    %233 = vector.load %arg6[%c0_90, %c0_91] : memref<16x128xf32, #tpu.memory_space<vmem>>, vector<16x128xf32>
    tpu.vector_store %arg6[%c0_90, %c0_91], %232 {strides = array<i32>} : memref<16x128xf32, #tpu.memory_space<vmem>>, vector<16x128xf32>,
    return
  }
}

</mosaic_0001>

<llo_original>
// kernel: gat_forward.1
$region0: #{gat_forward.1}
  #allocation0 [shape = 'u32[]', space=smem, size = 0x4, offset = 0x4, fixed_abs, tag = 'smem constant byte address 0x4 - core index']
  #allocation1 [shape = 'u32[144,128]{1,0:T(1,128)}', space=vmem, size = 0x12000, scoped, tag = 'internal scratch']
  %s0 = inlined_call_operand.vmem [shape: f32[16,128], index: 0, kind: input, shape index: {}]
  %s1 = inlined_call_operand.vmem [shape: s8[16,16], index: 1, kind: input, shape index: {}]
  %s2 = inlined_call_operand.vmem [shape: f32[128,512], index: 2, kind: input, shape index: {}]
  %s3 = inlined_call_operand.vmem [shape: f32[512,8], index: 3, kind: input, shape index: {}]
  %s4 = inlined_call_operand.vmem [shape: f32[4,128,128], index: 4, kind: input, shape index: {}]
  %s5 = inlined_call_operand.vmem [shape: f32[128,2], index: 5, kind: input, shape index: {}]
  %s6 = inlined_call_operand.vmem [shape: f32[16,128], index: 6, kind: output, shape index: {0}]
  %s7 = inlined_call_operand.vmem [shape: f32[4,16,16], index: 7, kind: output, shape index: {1}]
  %s8 = inlined_call_operand.hbm [shape: f32[16,16], index: 8, kind: output, shape index: {2}]
  %9 = xla_tuple %s6, %s7, %s8
  %s10 = sld [smem:[#allocation0]]
  $region50: #{gat_forward.1} parent=0
    _
  %s12 = ssub.s32 1, %s10
  %s13 = scalar_select 0, %s12, %s10
  $region1: #{gat_forward.1} parent=0
    #allocation2 [shape = 'u8[8192]{0}', space=vmem, size = 0x2000, scoped, tag = 'output window, operand 2, single buffered']
    #allocation3 [shape = 's32[1]{0}', space=sflag, size = 0x4, scoped, tag = 'scoped memory for gat_forward.1']
    %14 = vsyncpa [#allocation3], 0
    // Predicated region
    $region2: #{gat_forward.1} parent=1 // pred_check
      _
    $region3: #{gat_forward.1} parent=1 // pred_check_branch
      %16 = sbr.rel (0) target = $region5
    $region4: #{gat_forward.1} parent=1 // pred_region
      _
    $region5: #{gat_forward.1} parent=1 // pred_fallthru
      _
    // Predicated region
    $region6: #{gat_forward.1} parent=1 // pred_check
      _
    $region7: #{gat_forward.1} parent=1 // pred_check_branch
      %18 = sbr.rel (0) target = $region9
    $region8: #{gat_forward.1} parent=1 // pred_region
      _
    $region9: #{gat_forward.1} parent=1 // pred_fallthru
      _
    // Predicated region
    $region10: #{gat_forward.1} parent=1 // pred_check
      _
    $region11: #{gat_forward.1} parent=1 // pred_check_branch
      %20 = sbr.rel (0) target = $region13
    $region12: #{gat_forward.1} parent=1 // pred_region
      _
    $region13: #{gat_forward.1} parent=1 // pred_fallthru
      _
    // Predicated region
    $region14: #{gat_forward.1} parent=1 // pred_check
      _
    $region15: #{gat_forward.1} parent=1 // pred_check_branch
      %22 = sbr.rel (0) target = $region17
    $region16: #{gat_forward.1} parent=1 // pred_region
      _
    $region17: #{gat_forward.1} parent=1 // pred_fallthru
      _
    // Predicated region
    $region18: #{gat_forward.1} parent=1 // pred_check
      _
    $region19: #{gat_forward.1} parent=1 // pred_check_branch
      %24 = sbr.rel (0) target = $region21
    $region20: #{gat_forward.1} parent=1 // pred_region
      _
    $region21: #{gat_forward.1} parent=1 // pred_fallthru
      _
    // Predicated region
    $region22: #{gat_forward.1} parent=1 // pred_check
      _
    $region23: #{gat_forward.1} parent=1 // pred_check_branch
      %26 = sbr.rel (0) target = $region25
    $region24: #{gat_forward.1} parent=1 // pred_region
      _
    $region25: #{gat_forward.1} parent=1 // pred_fallthru
      _
    %v27 = vld [vmem:[%s0] sm:$0xff]
    %v28 = vld [vmem:[%s0 + $0x8] sm:$0xff]
    %v29 = vld [vmem:[%s1] sm:$0x3]
    %v30 = vld [vmem:[%s1 + $0x2] sm:$0x3]
    %v31 = vunpack.c.0.s8 %v29
    %v32 = vunpack.c.0.s8 %v30
    %v33 = vcvt.s32.f32 %v31
    %v34 = vcvt.s32.f32 %v32
    %vm35 = vcmp.gt.f32.partialorder %v33, 0.0
    %vm36 = vcmp.gt.f32.partialorder %v34, 0.0
    %v37 = vld [vmem:[%s2] sm:$0xff]
    %v38 = vld [vmem:[%s2 + $0x8] sm:$0xff]
    %v39 = vld [vmem:[%s2 + $0x10] sm:$0xff]
    %v40 = vld [vmem:[%s2 + $0x18] sm:$0xff]
    %v41 = vld [vmem:[%s2 + $0x20] sm:$0xff]
    %v42 = vld [vmem:[%s2 + $0x28] sm:$0xff]
    %v43 = vld [vmem:[%s2 + $0x30] sm:$0xff]
    %v44 = vld [vmem:[%s2 + $0x38] sm:$0xff]
    %v45 = vld [vmem:[%s2 + $0x40] sm:$0xff]
    %v46 = vld [vmem:[%s2 + $0x48] sm:$0xff]
    %v47 = vld [vmem:[%s2 + $0x50] sm:$0xff]
    %v48 = vld [vmem:[%s2 + $0x58] sm:$0xff]
    %v49 = vld [vmem:[%s2 + $0x60] sm:$0xff]
    %v50 = vld [vmem:[%s2 + $0x68] sm:$0xff]
    %v51 = vld [vmem:[%s2 + $0x70] sm:$0xff]
    %v52 = vld [vmem:[%s2 + $0x78] sm:$0xff]
    %v53 = vld [vmem:[%s2 + $0x80] sm:$0xff]
    %v54 = vld [vmem:[%s2 + $0x88] sm:$0xff]
    %v55 = vld [vmem:[%s2 + $0x90] sm:$0xff]
    %v56 = vld [vmem:[%s2 + $0x98] sm:$0xff]
    %v57 = vld [vmem:[%s2 + $0xa0] sm:$0xff]
    %v58 = vld [vmem:[%s2 + $0xa8] sm:$0xff]
    %v59 = vld [vmem:[%s2 + $0xb0] sm:$0xff]
    %v60 = vld [vmem:[%s2 + $0xb8] sm:$0xff]
    %v61 = vld [vmem:[%s2 + $0xc0] sm:$0xff]
    %v62 = vld [vmem:[%s2 + $0xc8] sm:$0xff]
    %v63 = vld [vmem:[%s2 + $0xd0] sm:$0xff]
    %v64 = vld [vmem:[%s2 + $0xd8] sm:$0xff]
    %v65 = vld [vmem:[%s2 + $0xe0] sm:$0xff]
    %v66 = vld [vmem:[%s2 + $0xe8] sm:$0xff]
    %v67 = vld [vmem:[%s2 + $0xf0] sm:$0xff]
    %v68 = vld [vmem:[%s2 + $0xf8] sm:$0xff]
    %v69 = vld [vmem:[%s2 + $0x100] sm:$0xff]
    %v70 = vld [vmem:[%s2 + $0x108] sm:$0xff]
    %v71 = vld [vmem:[%s2 + $0x110] sm:$0xff]
    %v72 = vld [vmem:[%s2 + $0x118] sm:$0xff]
    %v73 = vld [vmem:[%s2 + $0x120] sm:$0xff]
    %v74 = vld [vmem:[%s2 + $0x128] sm:$0xff]
    %v75 = vld [vmem:[%s2 + $0x130] sm:$0xff]
    %v76 = vld [vmem:[%s2 + $0x138] sm:$0xff]
    %v77 = vld [vmem:[%s2 + $0x140] sm:$0xff]
    %v78 = vld [vmem:[%s2 + $0x148] sm:$0xff]
    %v79 = vld [vmem:[%s2 + $0x150] sm:$0xff]
    %v80 = vld [vmem:[%s2 + $0x158] sm:$0xff]
    %v81 = vld [vmem:[%s2 + $0x160] sm:$0xff]
    %v82 = vld [vmem:[%s2 + $0x168] sm:$0xff]
    %v83 = vld [vmem:[%s2 + $0x170] sm:$0xff]
    %v84 = vld [vmem:[%s2 + $0x178] sm:$0xff]
    %v85 = vld [vmem:[%s2 + $0x180] sm:$0xff]
    %v86 = vld [vmem:[%s2 + $0x188] sm:$0xff]
    %v87 = vld [vmem:[%s2 + $0x190] sm:$0xff]
    %v88 = vld [vmem:[%s2 + $0x198] sm:$0xff]
    %v89 = vld [vmem:[%s2 + $0x1a0] sm:$0xff]
    %v90 = vld [vmem:[%s2 + $0x1a8] sm:$0xff]
    %v91 = vld [vmem:[%s2 + $0x1b0] sm:$0xff]
    %v92 = vld [vmem:[%s2 + $0x1b8] sm:$0xff]
    %v93 = vld [vmem:[%s2 + $0x1c0] sm:$0xff]
    %v94 = vld [vmem:[%s2 + $0x1c8] sm:$0xff]
    %v95 = vld [vmem:[%s2 + $0x1d0] sm:$0xff]
    %v96 = vld [vmem:[%s2 + $0x1d8] sm:$0xff]
    %v97 = vld [vmem:[%s2 + $0x1e0] sm:$0xff]
    %v98 = vld [vmem:[%s2 + $0x1e8] sm:$0xff]
    %v99 = vld [vmem:[%s2 + $0x1f0] sm:$0xff]
    %v100 = vld [vmem:[%s2 + $0x1f8] sm:$0xff]
    %101 = vmatprep.subr.mxu0 %v38
    %102 = vmatpush1.msra.mxu0 %v37
    %103 = vmatprep.subr.mxu0 %v42
    %104 = vmatpush1.msra.mxu0 %v41
    %105 = vmatprep.subr.mxu0 %v46
    %106 = vmatpush1.msra.mxu0 %v45
    %107 = vmatprep.subr.mxu0 %v50
    %108 = vmatpush1.msra.mxu0 %v49
    %109 = vmatprep.subr.mxu0 %v54
    %110 = vmatpush1.msra.mxu0 %v53
    %111 = vmatprep.subr.mxu0 %v58
    %112 = vmatpush1.msra.mxu0 %v57
    %113 = vmatprep.subr.mxu0 %v62
    %114 = vmatpush1.msra.mxu0 %v61
    %115 = vmatprep.subr.mxu0 %v66
    %116 = vmatpush1.msra.mxu0 %v65
    %117 = vmatprep.subr.mxu0 %v70
    %118 = vmatpush1.msra.mxu0 %v69
    %119 = vmatprep.subr.mxu0 %v74
    %120 = vmatpush1.msra.mxu0 %v73
    %121 = vmatprep.subr.mxu0 %v78
    %122 = vmatpush1.msra.mxu0 %v77
    %123 = vmatprep.subr.mxu0 %v82
    %124 = vmatpush1.msra.mxu0 %v81
    %125 = vmatprep.subr.mxu0 %v86
    %126 = vmatpush1.msra.mxu0 %v85
    %127 = vmatprep.subr.mxu0 %v90
    %128 = vmatpush1.msra.mxu0 %v89
    %129 = vmatprep.subr.mxu0 %v94
    %130 = vmatpush1.msra.mxu0 %v93
    %131 = vmatprep.subr.mxu0 %v98
    %132 = vmatpush1.msra.mxu0 %v97
    %133 = vmatprep.subr.mxu0 0.0
    %134 = vmatpush1.msra.mxu0 0.0
    %135 = vmatprep.subr.mxu0 0.0
    %136 = vmatpush1.msra.mxu0 0.0
    %137 = vmatprep.subr.mxu0 0.0
    %138 = vmatpush1.msra.mxu0 0.0
    %139 = vmatprep.subr.mxu0 0.0
    %140 = vmatpush1.msra.mxu0 0.0
    %141 = vmatprep.subr.mxu0 0.0
    %142 = vmatpush1.msra.mxu0 0.0
    %143 = vmatprep.subr.mxu0 0.0
    %144 = vmatpush1.msra.mxu0 0.0
    %145 = vmatprep.subr.mxu0 0.0
    %146 = vmatpush1.msra.mxu0 0.0
    %147 = vmatprep.subr.mxu0 0.0
    %148 = vmatpush1.msra.mxu0 0.0
    %149 = vmatprep.subr.mxu0 0.0
    %150 = vmatpush1.msra.mxu0 0.0
    %151 = vmatprep.subr.mxu0 0.0
    %152 = vmatpush1.msra.mxu0 0.0
    %153 = vmatprep.subr.mxu0 0.0
    %154 = vmatpush1.msra.mxu0 0.0
    %155 = vmatprep.subr.mxu0 0.0
    %156 = vmatpush1.msra.mxu0 0.0
    %157 = vmatprep.subr.mxu0 0.0
    %158 = vmatpush1.msra.mxu0 0.0
    %159 = vmatprep.subr.mxu0 0.0
    %160 = vmatpush1.msra.mxu0 0.0
    %161 = vmatprep.subr.mxu0 0.0
    %162 = vmatpush1.msra.mxu0 0.0
    %163 = vmatprep.subr.mxu0 0.0
    %164 = vmatpush1.msra.mxu0 0.0
    %165 = vmatprep.mubr.f32.mxu0 0.0
    %166 = vmatmul.mubr.f32.gmra.mrb[0].mxu0 %v27
    %v167 = vpop.f32.mrb[0].mxu0
    %v168 = vadd.f32 0.0, %v167
    %v169 = vpop.f32.mrb[0].mxu0
    %v170 = vadd.f32 0.0, %v169
    %171 = vmatprep.mubr.f32.mxu0 0.0
    %172 = vmatmul.mubr.f32.gmra.mrb[0].mxu0 %v28
    %v173 = vpop.f32.mrb[0].mxu0
    %v174 = vadd.f32 0.0, %v173
    %v175 = vpop.f32.mrb[0].mxu0
    %v176 = vadd.f32 0.0, %v175
    %177 = vdwg.mxu0
    %178 = vmatprep.subr.mxu0 %v40
    %179 = vmatpush1.msra.mxu0 %v39
    %180 = vmatprep.subr.mxu0 %v44
    %181 = vmatpush1.msra.mxu0 %v43
    %182 = vmatprep.subr.mxu0 %v48
    %183 = vmatpush1.msra.mxu0 %v47
    %184 = vmatprep.subr.mxu0 %v52
    %185 = vmatpush1.msra.mxu0 %v51
    %186 = vmatprep.subr.mxu0 %v56
    %187 = vmatpush1.msra.mxu0 %v55
    %188 = vmatprep.subr.mxu0 %v60
    %189 = vmatpush1.msra.mxu0 %v59
    %190 = vmatprep.subr.mxu0 %v64
    %191 = vmatpush1.msra.mxu0 %v63
    %192 = vmatprep.subr.mxu0 %v68
    %193 = vmatpush1.msra.mxu0 %v67
    %194 = vmatprep.subr.mxu0 %v72
    %195 = vmatpush1.msra.mxu0 %v71
    %196 = vmatprep.subr.mxu0 %v76
    %197 = vmatpush1.msra.mxu0 %v75
    %198 = vmatprep.subr.mxu0 %v80
    %199 = vmatpush1.msra.mxu0 %v79
    %200 = vmatprep.subr.mxu0 %v84
    %201 = vmatpush1.msra.mxu0 %v83
    %202 = vmatprep.subr.mxu0 %v88
    %203 = vmatpush1.msra.mxu0 %v87
    %204 = vmatprep.subr.mxu0 %v92
    %205 = vmatpush1.msra.mxu0 %v91
    %206 = vmatprep.subr.mxu0 %v96
    %207 = vmatpush1.msra.mxu0 %v95
    %208 = vmatprep.subr.mxu0 %v100
    %209 = vmatpush1.msra.mxu0 %v99
    %210 = vmatprep.subr.mxu0 0.0
    %211 = vmatpush1.msra.mxu0 0.0
    %212 = vmatprep.subr.mxu0 0.0
    %213 = vmatpush1.msra.mxu0 0.0
    %214 = vmatprep.subr.mxu0 0.0
    %215 = vmatpush1.msra.mxu0 0.0
    %216 = vmatprep.subr.mxu0 0.0
    %217 = vmatpush1.msra.mxu0 0.0
    %218 = vmatprep.subr.mxu0 0.0
    %219 = vmatpush1.msra.mxu0 0.0
    %220 = vmatprep.subr.mxu0 0.0
    %221 = vmatpush1.msra.mxu0 0.0
    %222 = vmatprep.subr.mxu0 0.0
    %223 = vmatpush1.msra.mxu0 0.0
    %224 = vmatprep.subr.mxu0 0.0
    %225 = vmatpush1.msra.mxu0 0.0
    %226 = vmatprep.subr.mxu0 0.0
    %227 = vmatpush1.msra.mxu0 0.0
    %228 = vmatprep.subr.mxu0 0.0
    %229 = vmatpush1.msra.mxu0 0.0
    %230 = vmatprep.subr.mxu0 0.0
    %231 = vmatpush1.msra.mxu0 0.0
    %232 = vmatprep.subr.mxu0 0.0
    %233 = vmatpush1.msra.mxu0 0.0
    %234 = vmatprep.subr.mxu0 0.0
    %235 = vmatpush1.msra.mxu0 0.0
    %236 = vmatprep.subr.mxu0 0.0
    %237 = vmatpush1.msra.mxu0 0.0
    %238 = vmatprep.subr.mxu0 0.0
    %239 = vmatpush1.msra.mxu0 0.0
    %240 = vmatprep.subr.mxu0 0.0
    %241 = vmatpush1.msra.mxu0 0.0
    %242 = vmatprep.mubr.f32.mxu0 0.0
    %243 = vmatmul.mubr.f32.gmra.mrb[0].mxu0 %v27
    %v244 = vpop.f32.mrb[0].mxu0
    %v245 = vadd.f32 0.0, %v244
    %v246 = vpop.f32.mrb[0].mxu0
    %v247 = vadd.f32 0.0, %v246
    %248 = vmatprep.mubr.f32.mxu0 0.0
    %249 = vmatmul.mubr.f32.gmra.mrb[0].mxu0 %v28
    %v250 = vpop.f32.mrb[0].mxu0
    %v251 = vadd.f32 0.0, %v250
    %v252 = vpop.f32.mrb[0].mxu0
    %v253 = vadd.f32 0.0, %v252
    %254 = vdwg.mxu0
    %v255 = vld [vmem:[%s3] sm:$0xff]
    %v256 = vld [vmem:[%s3 + $0x8] sm:$0xff]
    %v257 = vld [vmem:[%s3 + $0x10] sm:$0xff]
    %v258 = vld [vmem:[%s3 + $0x18] sm:$0xff]
    %v259 = vld [vmem:[%s3 + $0x20] sm:$0xff]
    %v260 = vld [vmem:[%s3 + $0x28] sm:$0xff]
    %v261 = vld [vmem:[%s3 + $0x30] sm:$0xff]
    %v262 = vld [vmem:[%s3 + $0x38] sm:$0xff]
    %v263 = vld [vmem:[%s3 + $0x40] sm:$0xff]
    %v264 = vld [vmem:[%s3 + $0x48] sm:$0xff]
    %v265 = vld [vmem:[%s3 + $0x50] sm:$0xff]
    %v266 = vld [vmem:[%s3 + $0x58] sm:$0xff]
    %v267 = vld [vmem:[%s3 + $0x60] sm:$0xff]
    %v268 = vld [vmem:[%s3 + $0x68] sm:$0xff]
    %v269 = vld [vmem:[%s3 + $0x70] sm:$0xff]
    %v270 = vld [vmem:[%s3 + $0x78] sm:$0xff]
    %v271 = vld [vmem:[%s3 + $0x80] sm:$0xff]
    %v272 = vld [vmem:[%s3 + $0x88] sm:$0xff]
    %v273 = vld [vmem:[%s3 + $0x90] sm:$0xff]
    %v274 = vld [vmem:[%s3 + $0x98] sm:$0xff]
    %v275 = vld [vmem:[%s3 + $0xa0] sm:$0xff]
    %v276 = vld [vmem:[%s3 + $0xa8] sm:$0xff]
    %v277 = vld [vmem:[%s3 + $0xb0] sm:$0xff]
    %v278 = vld [vmem:[%s3 + $0xb8] sm:$0xff]
    %v279 = vld [vmem:[%s3 + $0xc0] sm:$0xff]
    %v280 = vld [vmem:[%s3 + $0xc8] sm:$0xff]
    %v281 = vld [vmem:[%s3 + $0xd0] sm:$0xff]
    %v282 = vld [vmem:[%s3 + $0xd8] sm:$0xff]
    %v283 = vld [vmem:[%s3 + $0xe0] sm:$0xff]
    %v284 = vld [vmem:[%s3 + $0xe8] sm:$0xff]
    %v285 = vld [vmem:[%s3 + $0xf0] sm:$0xff]
    %v286 = vld [vmem:[%s3 + $0xf8] sm:$0xff]
    %v287 = vld [vmem:[%s3 + $0x100] sm:$0xff]
    %v288 = vld [vmem:[%s3 + $0x108] sm:$0xff]
    %v289 = vld [vmem:[%s3 + $0x110] sm:$0xff]
    %v290 = vld [vmem:[%s3 + $0x118] sm:$0xff]
    %v291 = vld [vmem:[%s3 + $0x120] sm:$0xff]
    %v292 = vld [vmem:[%s3 + $0x128] sm:$0xff]
    %v293 = vld [vmem:[%s3 + $0x130] sm:$0xff]
    %v294 = vld [vmem:[%s3 + $0x138] sm:$0xff]
    %v295 = vld [vmem:[%s3 + $0x140] sm:$0xff]
    %v296 = vld [vmem:[%s3 + $0x148] sm:$0xff]
    %v297 = vld [vmem:[%s3 + $0x150] sm:$0xff]
    %v298 = vld [vmem:[%s3 + $0x158] sm:$0xff]
    %v299 = vld [vmem:[%s3 + $0x160] sm:$0xff]
    %v300 = vld [vmem:[%s3 + $0x168] sm:$0xff]
    %v301 = vld [vmem:[%s3 + $0x170] sm:$0xff]
    %v302 = vld [vmem:[%s3 + $0x178] sm:$0xff]
    %v303 = vld [vmem:[%s3 + $0x180] sm:$0xff]
    %v304 = vld [vmem:[%s3 + $0x188] sm:$0xff]
    %v305 = vld [vmem:[%s3 + $0x190] sm:$0xff]
    %v306 = vld [vmem:[%s3 + $0x198] sm:$0xff]
    %v307 = vld [vmem:[%s3 + $0x1a0] sm:$0xff]
    %v308 = vld [vmem:[%s3 + $0x1a8] sm:$0xff]
    %v309 = vld [vmem:[%s3 + $0x1b0] sm:$0xff]
    %v310 = vld [vmem:[%s3 + $0x1b8] sm:$0xff]
    %v311 = vld [vmem:[%s3 + $0x1c0] sm:$0xff]
    %v312 = vld [vmem:[%s3 + $0x1c8] sm:$0xff]
    %v313 = vld [vmem:[%s3 + $0x1d0] sm:$0xff]
    %v314 = vld [vmem:[%s3 + $0x1d8] sm:$0xff]
    %v315 = vld [vmem:[%s3 + $0x1e0] sm:$0xff]
    %v316 = vld [vmem:[%s3 + $0x1e8] sm:$0xff]
    %v317 = vld [vmem:[%s3 + $0x1f0] sm:$0xff]
    %v318 = vld [vmem:[%s3 + $0x1f8] sm:$0xff]
    %319 = vmatprep.subr.mxu0 0.0
    %320 = vmatpush1.msra.mxu0 %v255
    %321 = vmatprep.subr.mxu0 0.0
    %322 = vmatpush1.msra.mxu0 %v256
    %323 = vmatprep.subr.mxu0 0.0
    %324 = vmatpush1.msra.mxu0 %v257
    %325 = vmatprep.subr.mxu0 0.0
    %326 = vmatpush1.msra.mxu0 %v258
    %327 = vmatprep.subr.mxu0 0.0
    %328 = vmatpush1.msra.mxu0 %v259
    %329 = vmatprep.subr.mxu0 0.0
    %330 = vmatpush1.msra.mxu0 %v260
    %331 = vmatprep.subr.mxu0 0.0
    %332 = vmatpush1.msra.mxu0 %v261
    %333 = vmatprep.subr.mxu0 0.0
    %334 = vmatpush1.msra.mxu0 %v262
    %335 = vmatprep.subr.mxu0 0.0
    %336 = vmatpush1.msra.mxu0 %v263
    %337 = vmatprep.subr.mxu0 0.0
    %338 = vmatpush1.msra.mxu0 %v264
    %339 = vmatprep.subr.mxu0 0.0
    %340 = vmatpush1.msra.mxu0 %v265
    %341 = vmatprep.subr.mxu0 0.0
    %342 = vmatpush1.msra.mxu0 %v266
    %343 = vmatprep.subr.mxu0 0.0
    %344 = vmatpush1.msra.mxu0 %v267
    %345 = vmatprep.subr.mxu0 0.0
    %346 = vmatpush1.msra.mxu0 %v268
    %347 = vmatprep.subr.mxu0 0.0
    %348 = vmatpush1.msra.mxu0 %v269
    %349 = vmatprep.subr.mxu0 0.0
    %350 = vmatpush1.msra.mxu0 %v270
    %351 = vmatprep.subr.mxu0 0.0
    %352 = vmatpush1.msra.mxu0 %v271
    %353 = vmatprep.subr.mxu0 0.0
    %354 = vmatpush1.msra.mxu0 %v272
    %355 = vmatprep.subr.mxu0 0.0
    %356 = vmatpush1.msra.mxu0 %v273
    %357 = vmatprep.subr.mxu0 0.0
    %358 = vmatpush1.msra.mxu0 %v274
    %359 = vmatprep.subr.mxu0 0.0
    %360 = vmatpush1.msra.mxu0 %v275
    %361 = vmatprep.subr.mxu0 0.0
    %362 = vmatpush1.msra.mxu0 %v276
    %363 = vmatprep.subr.mxu0 0.0
    %364 = vmatpush1.msra.mxu0 %v277
    %365 = vmatprep.subr.mxu0 0.0
    %366 = vmatpush1.msra.mxu0 %v278
    %367 = vmatprep.subr.mxu0 0.0
    %368 = vmatpush1.msra.mxu0 %v279
    %369 = vmatprep.subr.mxu0 0.0
    %370 = vmatpush1.msra.mxu0 %v280
    %371 = vmatprep.subr.mxu0 0.0
    %372 = vmatpush1.msra.mxu0 %v281
    %373 = vmatprep.subr.mxu0 0.0
    %374 = vmatpush1.msra.mxu0 %v282
    %375 = vmatprep.subr.mxu0 0.0
    %376 = vmatpush1.msra.mxu0 %v283
    %377 = vmatprep.subr.mxu0 0.0
    %378 = vmatpush1.msra.mxu0 %v284
    %379 = vmatprep.subr.mxu0 0.0
    %380 = vmatpush1.msra.mxu0 %v285
    %381 = vmatprep.subr.mxu0 0.0
    %382 = vmatpush1.msra.mxu0 %v286
    %383 = vmatprep.mubr.f32.mxu0 %v170
    %384 = vmatmul.mubr.f32.gmra.mrb[0].mxu0 %v168
    %v385 = vpop.f32.mrb[0].mxu0
    %v386 = vadd.f32 0.0, %v385
    %v387 = vpop.f32.mrb[0].mxu0
    %388 = vmatprep.mubr.f32.mxu0 %v176
    %389 = vmatmul.mubr.f32.gmra.mrb[0].mxu0 %v174
    %v390 = vpop.f32.mrb[0].mxu0
    %v391 = vadd.f32 0.0, %v390
    %v392 = vpop.f32.mrb[0].mxu0
    %393 = vdwg.mxu0
    %394 = vmatprep.subr.mxu0 0.0
    %395 = vmatpush1.msra.mxu0 %v287
    %396 = vmatprep.subr.mxu0 0.0
    %397 = vmatpush1.msra.mxu0 %v288
    %398 = vmatprep.subr.mxu0 0.0
    %399 = vmatpush1.msra.mxu0 %v289
    %400 = vmatprep.subr.mxu0 0.0
    %401 = vmatpush1.msra.mxu0 %v290
    %402 = vmatprep.subr.mxu0 0.0
    %403 = vmatpush1.msra.mxu0 %v291
    %404 = vmatprep.subr.mxu0 0.0
    %405 = vmatpush1.msra.mxu0 %v292
    %406 = vmatprep.subr.mxu0 0.0
    %407 = vmatpush1.msra.mxu0 %v293
    %408 = vmatprep.subr.mxu0 0.0
    %409 = vmatpush1.msra.mxu0 %v294
    %410 = vmatprep.subr.mxu0 0.0
    %411 = vmatpush1.msra.mxu0 %v295
    %412 = vmatprep.subr.mxu0 0.0
    %413 = vmatpush1.msra.mxu0 %v296
    %414 = vmatprep.subr.mxu0 0.0
    %415 = vmatpush1.msra.mxu0 %v297
    %416 = vmatprep.subr.mxu0 0.0
    %417 = vmatpush1.msra.mxu0 %v298
    %418 = vmatprep.subr.mxu0 0.0
    %419 = vmatpush1.msra.mxu0 %v299
    %420 = vmatprep.subr.mxu0 0.0
    %421 = vmatpush1.msra.mxu0 %v300
    %422 = vmatprep.subr.mxu0 0.0
    %423 = vmatpush1.msra.mxu0 %v301
    %424 = vmatprep.subr.mxu0 0.0
    %425 = vmatpush1.msra.mxu0 %v302
    %426 = vmatprep.subr.mxu0 0.0
    %427 = vmatpush1.msra.mxu0 %v303
    %428 = vmatprep.subr.mxu0 0.0
    %429 = vmatpush1.msra.mxu0 %v304
    %430 = vmatprep.subr.mxu0 0.0
    %431 = vmatpush1.msra.mxu0 %v305
    %432 = vmatprep.subr.mxu0 0.0
    %433 = vmatpush1.msra.mxu0 %v306
    %434 = vmatprep.subr.mxu0 0.0
    %435 = vmatpush1.msra.mxu0 %v307
    %436 = vmatprep.subr.mxu0 0.0
    %437 = vmatpush1.msra.mxu0 %v308
    %438 = vmatprep.subr.mxu0 0.0
    %439 = vmatpush1.msra.mxu0 %v309
    %440 = vmatprep.subr.mxu0 0.0
    %441 = vmatpush1.msra.mxu0 %v310
    %442 = vmatprep.subr.mxu0 0.0
    %443 = vmatpush1.msra.mxu0 %v311
    %444 = vmatprep.subr.mxu0 0.0
    %445 = vmatpush1.msra.mxu0 %v312
    %446 = vmatprep.subr.mxu0 0.0
    %447 = vmatpush1.msra.mxu0 %v313
    %448 = vmatprep.subr.mxu0 0.0
    %449 = vmatpush1.msra.mxu0 %v314
    %450 = vmatprep.subr.mxu0 0.0
    %451 = vmatpush1.msra.mxu0 %v315
    %452 = vmatprep.subr.mxu0 0.0
    %453 = vmatpush1.msra.mxu0 %v316
    %454 = vmatprep.subr.mxu0 0.0
    %455 = vmatpush1.msra.mxu0 %v317
    %456 = vmatprep.subr.mxu0 0.0
    %457 = vmatpush1.msra.mxu0 %v318
    %458 = vmatprep.mubr.f32.mxu0 %v247
    %459 = vmatmul.mubr.f32.gmra.mrb[0].mxu0 %v245
    %v460 = vpop.f32.mrb[0].mxu0
    %v461 = vadd.f32 %v386, %v460
    %v462 = vpop.f32.mrb[0].mxu0
    %463 = vmatprep.mubr.f32.mxu0 %v253
    %464 = vmatmul.mubr.f32.gmra.mrb[0].mxu0 %v251
    %v465 = vpop.f32.mrb[0].mxu0
    %v466 = vadd.f32 %v391, %v465
    %v467 = vpop.f32.mrb[0].mxu0
    %468 = vdwg.mxu0
    %471 = vrot.lane.b32.xlu0 %v461, 124
    %v472 = vpop.permute.xlu0 %471
    %473 = vrot.lane.b32.xlu0 %v466, 124
    %v474 = vpop.permute.xlu0 %473
    %477 = vxpose.xlu0.b32.start [1/16] %v472, 128
    %478 = vxpose.xlu0.b32.cont [2/16] %v474, 128
    %479 = vxpose.xlu0.b32.cont [3/16] 0.0, 128
    %480 = vxpose.xlu0.b32.cont [4/16] 0.0, 128
    %481 = vxpose.xlu0.b32.cont [5/16] 0.0, 128
    %482 = vxpose.xlu0.b32.cont [6/16] 0.0, 128
    %483 = vxpose.xlu0.b32.cont [7/16] 0.0, 128
    %484 = vxpose.xlu0.b32.cont [8/16] 0.0, 128
    %485 = vxpose.xlu0.b32.cont [9/16] 0.0, 128
    %486 = vxpose.xlu0.b32.cont [10/16] 0.0, 128
    %487 = vxpose.xlu0.b32.cont [11/16] 0.0, 128
    %488 = vxpose.xlu0.b32.cont [12/16] 0.0, 128
    %489 = vxpose.xlu0.b32.cont [13/16] 0.0, 128
    %490 = vxpose.xlu0.b32.cont [14/16] 0.0, 128
    %491 = vxpose.xlu0.b32.cont [15/16] 0.0, 128
    %492 = vxpose.xlu0.b32.end [16/16] 0.0, 128
    %v493 = vpop.trf.xlu0
    %v494 = vpop.trf.xlu0
    %v495 = vpop.trf.xlu0
    %v496 = vpop.trf.xlu0
    %v497 = vpop.trf.xlu0
    %v498 = vpop.trf.xlu0
    %v499 = vpop.trf.xlu0
    %v500 = vpop.trf.xlu0
    %v501 = vpop.trf.xlu0
    %v502 = vpop.trf.xlu0
    %v503 = vpop.trf.xlu0
    %v504 = vpop.trf.xlu0
    %v505 = vpop.trf.xlu0
    %v506 = vpop.trf.xlu0
    %v507 = vpop.trf.xlu0
    %v508 = vpop.trf.xlu0
    %509 = vset.pattern.permute.xlu0 0
    %510 = vperm.xlu0 %509, %v461
    %v511 = vpop.permute.xlu0 %510
    %513 = vset.pattern.permute.xlu0 0
    %514 = vperm.xlu0 %513, %v466
    %v515 = vpop.permute.xlu0 %514
    %v517 = vlaneseq
    %v518 = vshrl.u32 %v517, 7
    %v519 = vsub.s32 0, %v518
    %v520 = vrot.slane %v493, %v519
    %v521 = vadd.f32 %v511, %v520
    %v522 = vadd.f32 %v515, %v520
    %vm523 = vcmp.gt.f32.partialorder %v521, 0.0
    %vm524 = vcmp.gt.f32.partialorder %v522, 0.0
    %v525 = vmul.f32 %v521, 0.2
    %v526 = vmul.f32 %v522, 0.2
    %v527 = vsel %vm523, %v521, %v525
    %v528 = vsel %vm524, %v522, %v526
    %v529 = vsel %vm35, %v527, -9e+16
    %v530 = vsel %vm36, %v528, -9e+16
    %vm531 = vcmask 130048
    %v532 = vsel %vm531, %v529, -inf
    %533 = vmax.xlane.f32.xlu0 %v532
    %v534 = vpop.xlane.xlu0 %533
    %v535 = vsel %vm531, %v530, -inf
    %536 = vmax.xlane.f32.xlu0 %v535
    %v537 = vpop.xlane.xlu0 %536
    %v538 = vsub.f32 %v529, %v534
    %v539 = vsub.f32 %v530, %v537
    %v540 = vmul.f32 %v538, 1.442695
    %v541 = vpow.pop %v540
    %v542 = vmul.f32 %v539, 1.442695
    %v543 = vpow.pop %v542
    %v544 = vsel %vm531, %v541, 0.0
    %545 = vadd.xlane.f32.xlu0 %v544
    %v546 = vpop.xlane.xlu0 %545
    %v547 = vsel %vm531, %v543, 0.0
    %548 = vadd.xlane.f32.xlu0 %v547
    %v549 = vpop.xlane.xlu0 %548
    %v550 = vrcp.pop %v546
    %v551 = vrcp.pop %v549
    %v552 = vmul.f32 %v546, %v550
    %v553 = vmul.f32 %v549, %v551
    %v554 = vsub.f32 2.0, %v552
    %v555 = vsub.f32 2.0, %v553
    %v556 = vmul.f32 %v550, %v554
    %v557 = vmul.f32 %v551, %v555
    %v558 = vmul.f32 %v541, %v556
    %v559 = vmul.f32 %v543, %v557
    %560 = vst.msk [vmem:[%s7] sm:$0xff] %vm531, %v558
    %561 = vst.msk [vmem:[%s7 + $0x8] sm:$0xff] %vm531, %v559
    %v563 = vsel %vm531, %v558, 0
    %v566 = vsel %vm531, %v559, 0
    %568 = vmatprep.subr.mxu0 0.0
    %569 = vmatpush1.msra.mxu0 %v168
    %570 = vmatprep.subr.mxu0 0.0
    %571 = vmatpush1.msra.mxu0 %v174
    %572 = vmatprep.subr.mxu0 0.0
    %573 = vmatpush1.msra.mxu0 0.0
    %574 = vmatprep.subr.mxu0 0.0
    %575 = vmatpush1.msra.mxu0 0.0
    %576 = vmatprep.subr.mxu0 0.0
    %577 = vmatpush1.msra.mxu0 0.0
    %578 = vmatprep.subr.mxu0 0.0
    %579 = vmatpush1.msra.mxu0 0.0
    %580 = vmatprep.subr.mxu0 0.0
    %581 = vmatpush1.msra.mxu0 0.0
    %582 = vmatprep.subr.mxu0 0.0
    %583 = vmatpush1.msra.mxu0 0.0
    %584 = vmatprep.subr.mxu0 0.0
    %585 = vmatpush1.msra.mxu0 0.0
    %586 = vmatprep.subr.mxu0 0.0
    %587 = vmatpush1.msra.mxu0 0.0
    %588 = vmatprep.subr.mxu0 0.0
    %589 = vmatpush1.msra.mxu0 0.0
    %590 = vmatprep.subr.mxu0 0.0
    %591 = vmatpush1.msra.mxu0 0.0
    %592 = vmatprep.subr.mxu0 0.0
    %593 = vmatpush1.msra.mxu0 0.0
    %594 = vmatprep.subr.mxu0 0.0
    %595 = vmatpush1.msra.mxu0 0.0
    %596 = vmatprep.subr.mxu0 0.0
    %597 = vmatpush1.msra.mxu0 0.0
    %598 = vmatprep.subr.mxu0 0.0
    %599 = vmatpush1.msra.mxu0 0.0
    %600 = vmatprep.subr.mxu0 0.0
    %601 = vmatpush1.msra.mxu0 0.0
    %602 = vmatprep.subr.mxu0 0.0
    %603 = vmatpush1.msra.mxu0 0.0
    %604 = vmatprep.subr.mxu0 0.0
    %605 = vmatpush1.msra.mxu0 0.0
    %606 = vmatprep.subr.mxu0 0.0
    %607 = vmatpush1.msra.mxu0 0.0
    %608 = vmatprep.subr.mxu0 0.0
    %609 = vmatpush1.msra.mxu0 0.0
    %610 = vmatprep.subr.mxu0 0.0
    %611 = vmatpush1.msra.mxu0 0.0
    %612 = vmatprep.subr.mxu0 0.0
    %613 = vmatpush1.msra.mxu0 0.0
    %614 = vmatprep.subr.mxu0 0.0
    %615 = vmatpush1.msra.mxu0 0.0
    %616 = vmatprep.subr.mxu0 0.0
    %617 = vmatpush1.msra.mxu0 0.0
    %618 = vmatprep.subr.mxu0 0.0
    %619 = vmatpush1.msra.mxu0 0.0
    %620 = vmatprep.subr.mxu0 0.0
    %621 = vmatpush1.msra.mxu0 0.0
    %622 = vmatprep.subr.mxu0 0.0
    %623 = vmatpush1.msra.mxu0 0.0
    %624 = vmatprep.subr.mxu0 0.0
    %625 = vmatpush1.msra.mxu0 0.0
    %626 = vmatprep.subr.mxu0 0.0
    %627 = vmatpush1.msra.mxu0 0.0
    %628 = vmatprep.subr.mxu0 0.0
    %629 = vmatpush1.msra.mxu0 0.0
    %630 = vmatprep.subr.mxu0 0.0
    %631 = vmatpush1.msra.mxu0 0.0
    %632 = vmatprep.mubr.f32.mxu0 0.0
    %633 = vmatmul.mubr.f32.gmra.mrb[0].mxu0 %v563
    %v634 = vpop.f32.mrb[0].mxu0
    %v635 = vadd.f32 0.0, %v634
    %v636 = vpop.f32.mrb[0].mxu0
    %637 = vmatprep.mubr.f32.mxu0 0.0
    %638 = vmatmul.mubr.f32.gmra.mrb[0].mxu0 %v566
    %v639 = vpop.f32.mrb[0].mxu0
    %v640 = vadd.f32 0.0, %v639
    %v641 = vpop.f32.mrb[0].mxu0
    %642 = vdwg.mxu0
    %vm643 = vcmp.gt.f32.partialorder %v635, 0.0
    %vm644 = vcmp.gt.f32.partialorder %v640, 0.0
    %v645 = vmin.f32 %v635, 0.0
    %v646 = vmin.f32 %v640, 0.0
    %v647 = vmul.f32 %v645, 1.442695
    %v648 = vpow.pop %v647
    %v649 = vmul.f32 %v646, 1.442695
    %v650 = vpow.pop %v649
    %v651 = vsub.f32 %v648, 1.0
    %v652 = vsub.f32 %v650, 1.0
    %v653 = vsel %vm643, %v635, %v651
    %v654 = vsel %vm644, %v640, %v652
    %v655 = vld [vmem:[%s4] sm:$0xff]
    %v656 = vld [vmem:[%s4 + $0x8] sm:$0xff]
    %v657 = vld [vmem:[%s4 + $0x10] sm:$0xff]
    %v658 = vld [vmem:[%s4 + $0x18] sm:$0xff]
    %v659 = vld [vmem:[%s4 + $0x20] sm:$0xff]
    %v660 = vld [vmem:[%s4 + $0x28] sm:$0xff]
    %v661 = vld [vmem:[%s4 + $0x30] sm:$0xff]
    %v662 = vld [vmem:[%s4 + $0x38] sm:$0xff]
    %v663 = vld [vmem:[%s4 + $0x40] sm:$0xff]
    %v664 = vld [vmem:[%s4 + $0x48] sm:$0xff]
    %v665 = vld [vmem:[%s4 + $0x50] sm:$0xff]
    %v666 = vld [vmem:[%s4 + $0x58] sm:$0xff]
    %v667 = vld [vmem:[%s4 + $0x60] sm:$0xff]
    %v668 = vld [vmem:[%s4 + $0x68] sm:$0xff]
    %v669 = vld [vmem:[%s4 + $0x70] sm:$0xff]
    %v670 = vld [vmem:[%s4 + $0x78] sm:$0xff]
    %671 = vrot.lane.b32.xlu0 %v461, 123
    %v672 = vpop.permute.xlu0 %671
    %673 = vrot.lane.b32.xlu0 %v466, 123
    %v674 = vpop.permute.xlu0 %673
    %677 = vxpose.xlu0.b32.start [1/16] %v672, 128
    %678 = vxpose.xlu0.b32.cont [2/16] %v674, 128
    %679 = vxpose.xlu0.b32.cont [3/16] 0.0, 128
    %680 = vxpose.xlu0.b32.cont [4/16] 0.0, 128
    %681 = vxpose.xlu0.b32.cont [5/16] 0.0, 128
    %682 = vxpose.xlu0.b32.cont [6/16] 0.0, 128
    %683 = vxpose.xlu0.b32.cont [7/16] 0.0, 128
    %684 = vxpose.xlu0.b32.cont [8/16] 0.0, 128
    %685 = vxpose.xlu0.b32.cont [9/16] 0.0, 128
    %686 = vxpose.xlu0.b32.cont [10/16] 0.0, 128
    %687 = vxpose.xlu0.b32.cont [11/16] 0.0, 128
    %688 = vxpose.xlu0.b32.cont [12/16] 0.0, 128
    %689 = vxpose.xlu0.b32.cont [13/16] 0.0, 128
    %690 = vxpose.xlu0.b32.cont [14/16] 0.0, 128
    %691 = vxpose.xlu0.b32.cont [15/16] 0.0, 128
    %692 = vxpose.xlu0.b32.end [16/16] 0.0, 128
    %v693 = vpop.trf.xlu0
    %v694 = vpop.trf.xlu0
    %v695 = vpop.trf.xlu0
    %v696 = vpop.trf.xlu0
    %v697 = vpop.trf.xlu0
    %v698 = vpop.trf.xlu0
    %v699 = vpop.trf.xlu0
    %v700 = vpop.trf.xlu0
    %v701 = vpop.trf.xlu0
    %v702 = vpop.trf.xlu0
    %v703 = vpop.trf.xlu0
    %v704 = vpop.trf.xlu0
    %v705 = vpop.trf.xlu0
    %v706 = vpop.trf.xlu0
    %v707 = vpop.trf.xlu0
    %v708 = vpop.trf.xlu0
    %709 = vset.pattern.permute.xlu0 1
    %710 = vperm.xlu0 %709, %v461
    %v711 = vpop.permute.xlu0 %710
    %713 = vset.pattern.permute.xlu0 1
    %714 = vperm.xlu0 %713, %v466
    %v715 = vpop.permute.xlu0 %714
    %v717 = vlaneseq
    %v718 = vshrl.u32 %v717, 7
    %v719 = vsub.s32 0, %v718
    %v720 = vrot.slane %v693, %v719
    %v721 = vadd.f32 %v711, %v720
    %v722 = vadd.f32 %v715, %v720
    %vm723 = vcmp.gt.f32.partialorder %v721, 0.0
    %vm724 = vcmp.gt.f32.partialorder %v722, 0.0
    %v725 = vmul.f32 %v721, 0.2
    %v726 = vmul.f32 %v722, 0.2
    %v727 = vsel %vm723, %v721, %v725
    %v728 = vsel %vm724, %v722, %v726
    %v729 = vsel %vm35, %v727, -9e+16
    %v730 = vsel %vm36, %v728, -9e+16
    %v731 = vsel %vm531, %v729, -inf
    %732 = vmax.xlane.f32.xlu0 %v731
    %v733 = vpop.xlane.xlu0 %732
    %v734 = vsel %vm531, %v730, -inf
    %735 = vmax.xlane.f32.xlu0 %v734
    %v736 = vpop.xlane.xlu0 %735
    %v737 = vsub.f32 %v729, %v733
    %v738 = vsub.f32 %v730, %v736
    %v739 = vmul.f32 %v737, 1.442695
    %v740 = vpow.pop %v739
    %v741 = vmul.f32 %v738, 1.442695
    %v742 = vpow.pop %v741
    %v743 = vsel %vm531, %v740, 0.0
    %744 = vadd.xlane.f32.xlu0 %v743
    %v745 = vpop.xlane.xlu0 %744
    %v746 = vsel %vm531, %v742, 0.0
    %747 = vadd.xlane.f32.xlu0 %v746
    %v748 = vpop.xlane.xlu0 %747
    %v749 = vrcp.pop %v745
    %v750 = vrcp.pop %v748
    %v751 = vmul.f32 %v745, %v749
    %v752 = vmul.f32 %v748, %v750
    %v753 = vsub.f32 2.0, %v751
    %v754 = vsub.f32 2.0, %v752
    %v755 = vmul.f32 %v749, %v753
    %v756 = vmul.f32 %v750, %v754
    %v757 = vmul.f32 %v740, %v755
    %v758 = vmul.f32 %v742, %v756
    %s759 = scalar_lea.vmem %s7, 16
    %760 = vst.msk [vmem:[%s759] sm:$0xff] %vm531, %v757
    %761 = vst.msk [vmem:[%s759 + $0x8] sm:$0xff] %vm531, %v758
    %v763 = vsel %vm531, %v757, 0
    %v766 = vsel %vm531, %v758, 0
    %768 = vmatprep.subr.mxu0 0.0
    %769 = vmatpush1.msra.mxu0 %v170
    %770 = vmatprep.subr.mxu0 0.0
    %771 = vmatpush1.msra.mxu0 %v176
    %772 = vmatprep.subr.mxu0 0.0
    %773 = vmatpush1.msra.mxu0 0.0
    %774 = vmatprep.subr.mxu0 0.0
    %775 = vmatpush1.msra.mxu0 0.0
    %776 = vmatprep.subr.mxu0 0.0
    %777 = vmatpush1.msra.mxu0 0.0
    %778 = vmatprep.subr.mxu0 0.0
    %779 = vmatpush1.msra.mxu0 0.0
    %780 = vmatprep.subr.mxu0 0.0
    %781 = vmatpush1.msra.mxu0 0.0
    %782 = vmatprep.subr.mxu0 0.0
    %783 = vmatpush1.msra.mxu0 0.0
    %784 = vmatprep.subr.mxu0 0.0
    %785 = vmatpush1.msra.mxu0 0.0
    %786 = vmatprep.subr.mxu0 0.0
    %787 = vmatpush1.msra.mxu0 0.0
    %788 = vmatprep.subr.mxu0 0.0
    %789 = vmatpush1.msra.mxu0 0.0
    %790 = vmatprep.subr.mxu0 0.0
    %791 = vmatpush1.msra.mxu0 0.0
    %792 = vmatprep.subr.mxu0 0.0
    %793 = vmatpush1.msra.mxu0 0.0
    %794 = vmatprep.subr.mxu0 0.0
    %795 = vmatpush1.msra.mxu0 0.0
    %796 = vmatprep.subr.mxu0 0.0
    %797 = vmatpush1.msra.mxu0 0.0
    %798 = vmatprep.subr.mxu0 0.0
    %799 = vmatpush1.msra.mxu0 0.0
    %800 = vmatprep.subr.mxu0 0.0
    %801 = vmatpush1.msra.mxu0 0.0
    %802 = vmatprep.subr.mxu0 0.0
    %803 = vmatpush1.msra.mxu0 0.0
    %804 = vmatprep.subr.mxu0 0.0
    %805 = vmatpush1.msra.mxu0 0.0
    %806 = vmatprep.subr.mxu0 0.0
    %807 = vmatpush1.msra.mxu0 0.0
    %808 = vmatprep.subr.mxu0 0.0
    %809 = vmatpush1.msra.mxu0 0.0
    %810 = vmatprep.subr.mxu0 0.0
    %811 = vmatpush1.msra.mxu0 0.0
    %812 = vmatprep.subr.mxu0 0.0
    %813 = vmatpush1.msra.mxu0 0.0
    %814 = vmatprep.subr.mxu0 0.0
    %815 = vmatpush1.msra.mxu0 0.0
    %816 = vmatprep.subr.mxu0 0.0
    %817 = vmatpush1.msra.mxu0 0.0
    %818 = vmatprep.subr.mxu0 0.0
    %819 = vmatpush1.msra.mxu0 0.0
    %820 = vmatprep.subr.mxu0 0.0
    %821 = vmatpush1.msra.mxu0 0.0
    %822 = vmatprep.subr.mxu0 0.0
    %823 = vmatpush1.msra.mxu0 0.0
    %824 = vmatprep.subr.mxu0 0.0
    %825 = vmatpush1.msra.mxu0 0.0
    %826 = vmatprep.subr.mxu0 0.0
    %827 = vmatpush1.msra.mxu0 0.0
    %828 = vmatprep.subr.mxu0 0.0
    %829 = vmatpush1.msra.mxu0 0.0
    %830 = vmatprep.subr.mxu0 0.0
    %831 = vmatpush1.msra.mxu0 0.0
    %832 = vmatprep.mubr.f32.mxu0 0.0
    %833 = vmatmul.mubr.f32.gmra.mrb[0].mxu0 %v763
    %v834 = vpop.f32.mrb[0].mxu0
    %v835 = vadd.f32 0.0, %v834
    %v836 = vpop.f32.mrb[0].mxu0
    %837 = vmatprep.mubr.f32.mxu0 0.0
    %838 = vmatmul.mubr.f32.gmra.mrb[0].mxu0 %v766
    %v839 = vpop.f32.mrb[0].mxu0
    %v840 = vadd.f32 0.0, %v839
    %v841 = vpop.f32.mrb[0].mxu0
    %842 = vdwg.mxu0
    %vm843 = vcmp.gt.f32.partialorder %v835, 0.0
    %vm844 = vcmp.gt.f32.partialorder %v840, 0.0
    %v845 = vmin.f32 %v835, 0.0
    %v846 = vmin.f32 %v840, 0.0
    %v847 = vmul.f32 %v845, 1.442695
    %v848 = vpow.pop %v847
    %v849 = vmul.f32 %v846, 1.442695
    %v850 = vpow.pop %v849
    %v851 = vsub.f32 %v848, 1.0
    %v852 = vsub.f32 %v850, 1.0
    %v853 = vsel %vm843, %v835, %v851
    %v854 = vsel %vm844, %v840, %v852
    %s855 = scalar_lea.vmem %s4, 128
    %v856 = vld [vmem:[%s855] sm:$0xff]
    %v857 = vld [vmem:[%s855 + $0x8] sm:$0xff]
    %v858 = vld [vmem:[%s855 + $0x10] sm:$0xff]
    %v859 = vld [vmem:[%s855 + $0x18] sm:$0xff]
    %v860 = vld [vmem:[%s855 + $0x20] sm:$0xff]
    %v861 = vld [vmem:[%s855 + $0x28] sm:$0xff]
    %v862 = vld [vmem:[%s855 + $0x30] sm:$0xff]
    %v863 = vld [vmem:[%s855 + $0x38] sm:$0xff]
    %v864 = vld [vmem:[%s855 + $0x40] sm:$0xff]
    %v865 = vld [vmem:[%s855 + $0x48] sm:$0xff]
    %v866 = vld [vmem:[%s855 + $0x50] sm:$0xff]
    %v867 = vld [vmem:[%s855 + $0x58] sm:$0xff]
    %v868 = vld [vmem:[%s855 + $0x60] sm:$0xff]
    %v869 = vld [vmem:[%s855 + $0x68] sm:$0xff]
    %v870 = vld [vmem:[%s855 + $0x70] sm:$0xff]
    %v871 = vld [vmem:[%s855 + $0x78] sm:$0xff]
    %872 = vmatprep.subr.mxu0 0.0
    %873 = vmatpush1.msra.mxu0 %v856
    %874 = vmatprep.subr.mxu0 0.0
    %875 = vmatpush1.msra.mxu0 %v857
    %876 = vmatprep.subr.mxu0 0.0
    %877 = vmatpush1.msra.mxu0 %v858
    %878 = vmatprep.subr.mxu0 0.0
    %879 = vmatpush1.msra.mxu0 %v859
    %880 = vmatprep.subr.mxu0 0.0
    %881 = vmatpush1.msra.mxu0 %v860
    %882 = vmatprep.subr.mxu0 0.0
    %883 = vmatpush1.msra.mxu0 %v861
    %884 = vmatprep.subr.mxu0 0.0
    %885 = vmatpush1.msra.mxu0 %v862
    %886 = vmatprep.subr.mxu0 0.0
    %887 = vmatpush1.msra.mxu0 %v863
    %888 = vmatprep.subr.mxu0 0.0
    %889 = vmatpush1.msra.mxu0 %v864
    %890 = vmatprep.subr.mxu0 0.0
    %891 = vmatpush1.msra.mxu0 %v865
    %892 = vmatprep.subr.mxu0 0.0
    %893 = vmatpush1.msra.mxu0 %v866
    %894 = vmatprep.subr.mxu0 0.0
    %895 = vmatpush1.msra.mxu0 %v867
    %896 = vmatprep.subr.mxu0 0.0
    %897 = vmatpush1.msra.mxu0 %v868
    %898 = vmatprep.subr.mxu0 0.0
    %899 = vmatpush1.msra.mxu0 %v869
    %900 = vmatprep.subr.mxu0 0.0
    %901 = vmatpush1.msra.mxu0 %v870
    %902 = vmatprep.subr.mxu0 0.0
    %903 = vmatpush1.msra.mxu0 %v871
    %904 = vmatprep.subr.mxu0 0.0
    %905 = vmatpush1.msra.mxu0 0.0
    %906 = vmatprep.subr.mxu0 0.0
    %907 = vmatpush1.msra.mxu0 0.0
    %908 = vmatprep.subr.mxu0 0.0
    %909 = vmatpush1.msra.mxu0 0.0
    %910 = vmatprep.subr.mxu0 0.0
    %911 = vmatpush1.msra.mxu0 0.0
    %912 = vmatprep.subr.mxu0 0.0
    %913 = vmatpush1.msra.mxu0 0.0
    %914 = vmatprep.subr.mxu0 0.0
    %915 = vmatpush1.msra.mxu0 0.0
    %916 = vmatprep.subr.mxu0 0.0
    %917 = vmatpush1.msra.mxu0 0.0
    %918 = vmatprep.subr.mxu0 0.0
    %919 = vmatpush1.msra.mxu0 0.0
    %920 = vmatprep.subr.mxu0 0.0
    %921 = vmatpush1.msra.mxu0 0.0
    %922 = vmatprep.subr.mxu0 0.0
    %923 = vmatpush1.msra.mxu0 0.0
    %924 = vmatprep.subr.mxu0 0.0
    %925 = vmatpush1.msra.mxu0 0.0
    %926 = vmatprep.subr.mxu0 0.0
    %927 = vmatpush1.msra.mxu0 0.0
    %928 = vmatprep.subr.mxu0 0.0
    %929 = vmatpush1.msra.mxu0 0.0
    %930 = vmatprep.subr.mxu0 0.0
    %931 = vmatpush1.msra.mxu0 0.0
    %932 = vmatprep.subr.mxu0 0.0
    %933 = vmatpush1.msra.mxu0 0.0
    %934 = vmatprep.subr.mxu0 0.0
    %935 = vmatpush1.msra.mxu0 0.0
    %936 = vmatprep.mubr.f32.mxu0 0.0
    %937 = vmatmul.mubr.f32.gmra.mrb[0].mxu0 %v853
    %v938 = vpop.f32.mrb[0].mxu0
    %v939 = vadd.f32 0.0, %v938
    %v940 = vpop.f32.mrb[0].mxu0
    %941 = vmatprep.mubr.f32.mxu0 0.0
    %942 = vmatmul.mubr.f32.gmra.mrb[0].mxu0 %v854
    %v943 = vpop.f32.mrb[0].mxu0
    %v944 = vadd.f32 0.0, %v943
    %v945 = vpop.f32.mrb[0].mxu0
    %946 = vdwg.mxu0
    %947 = vmatprep.subr.mxu0 0.0
    %948 = vmatpush1.msra.mxu0 %v655
    %949 = vmatprep.subr.mxu0 0.0
    %950 = vmatpush1.msra.mxu0 %v656
    %951 = vmatprep.subr.mxu0 0.0
    %952 = vmatpush1.msra.mxu0 %v657
    %953 = vmatprep.subr.mxu0 0.0
    %954 = vmatpush1.msra.mxu0 %v658
    %955 = vmatprep.subr.mxu0 0.0
    %956 = vmatpush1.msra.mxu0 %v659
    %957 = vmatprep.subr.mxu0 0.0
    %958 = vmatpush1.msra.mxu0 %v660
    %959 = vmatprep.subr.mxu0 0.0
    %960 = vmatpush1.msra.mxu0 %v661
    %961 = vmatprep.subr.mxu0 0.0
    %962 = vmatpush1.msra.mxu0 %v662
    %963 = vmatprep.subr.mxu0 0.0
    %964 = vmatpush1.msra.mxu0 %v663
    %965 = vmatprep.subr.mxu0 0.0
    %966 = vmatpush1.msra.mxu0 %v664
    %967 = vmatprep.subr.mxu0 0.0
    %968 = vmatpush1.msra.mxu0 %v665
    %969 = vmatprep.subr.mxu0 0.0
    %970 = vmatpush1.msra.mxu0 %v666
    %971 = vmatprep.subr.mxu0 0.0
    %972 = vmatpush1.msra.mxu0 %v667
    %973 = vmatprep.subr.mxu0 0.0
    %974 = vmatpush1.msra.mxu0 %v668
    %975 = vmatprep.subr.mxu0 0.0
    %976 = vmatpush1.msra.mxu0 %v669
    %977 = vmatprep.subr.mxu0 0.0
    %978 = vmatpush1.msra.mxu0 %v670
    %979 = vmatprep.subr.mxu0 0.0
    %980 = vmatpush1.msra.mxu0 0.0
    %981 = vmatprep.subr.mxu0 0.0
    %982 = vmatpush1.msra.mxu0 0.0
    %983 = vmatprep.subr.mxu0 0.0
    %984 = vmatpush1.msra.mxu0 0.0
    %985 = vmatprep.subr.mxu0 0.0
    %986 = vmatpush1.msra.mxu0 0.0
    %987 = vmatprep.subr.mxu0 0.0
    %988 = vmatpush1.msra.mxu0 0.0
    %989 = vmatprep.subr.mxu0 0.0
    %990 = vmatpush1.msra.mxu0 0.0
    %991 = vmatprep.subr.mxu0 0.0
    %992 = vmatpush1.msra.mxu0 0.0
    %993 = vmatprep.subr.mxu0 0.0
    %994 = vmatpush1.msra.mxu0 0.0
    %995 = vmatprep.subr.mxu0 0.0
    %996 = vmatpush1.msra.mxu0 0.0
    %997 = vmatprep.subr.mxu0 0.0
    %998 = vmatpush1.msra.mxu0 0.0
    %999 = vmatprep.subr.mxu0 0.0
    %1000 = vmatpush1.msra.mxu0 0.0
    %1001 = vmatprep.subr.mxu0 0.0
    %1002 = vmatpush1.msra.mxu0 0.0
    %1003 = vmatprep.subr.mxu0 0.0
    %1004 = vmatpush1.msra.mxu0 0.0
    %1005 = vmatprep.subr.mxu0 0.0
    %1006 = vmatpush1.msra.mxu0 0.0
    %1007 = vmatprep.subr.mxu0 0.0
    %1008 = vmatpush1.msra.mxu0 0.0
    %1009 = vmatprep.subr.mxu0 0.0
    %1010 = vmatpush1.msra.mxu0 0.0
    %1011 = vmatprep.mubr.f32.mxu0 0.0
    %1012 = vmatmul.mubr.f32.gmra.mrb[0].mxu0 %v653
    %v1013 = vpop.f32.mrb[0].mxu0
    %v1014 = vadd.f32 %v939, %v1013
    %v1015 = vpop.f32.mrb[0].mxu0
    %1016 = vmatprep.mubr.f32.mxu0 0.0
    %1017 = vmatmul.mubr.f32.gmra.mrb[0].mxu0 %v654
    %v1018 = vpop.f32.mrb[0].mxu0
    %v1019 = vadd.f32 %v944, %v1018
    %v1020 = vpop.f32.mrb[0].mxu0
    %1021 = vdwg.mxu0
    %1022 = vrot.lane.b32.xlu0 %v461, 122
    %v1023 = vpop.permute.xlu0 %1022
    %1024 = vrot.lane.b32.xlu0 %v466, 122
    %v1025 = vpop.permute.xlu0 %1024
    %1028 = vxpose.xlu0.b32.start [1/16] %v1023, 128
    %1029 = vxpose.xlu0.b32.cont [2/16] %v1025, 128
    %1030 = vxpose.xlu0.b32.cont [3/16] 0.0, 128
    %1031 = vxpose.xlu0.b32.cont [4/16] 0.0, 128
    %1032 = vxpose.xlu0.b32.cont [5/16] 0.0, 128
    %1033 = vxpose.xlu0.b32.cont [6/16] 0.0, 128
    %1034 = vxpose.xlu0.b32.cont [7/16] 0.0, 128
    %1035 = vxpose.xlu0.b32.cont [8/16] 0.0, 128
    %1036 = vxpose.xlu0.b32.cont [9/16] 0.0, 128
    %1037 = vxpose.xlu0.b32.cont [10/16] 0.0, 128
    %1038 = vxpose.xlu0.b32.cont [11/16] 0.0, 128
    %1039 = vxpose.xlu0.b32.cont [12/16] 0.0, 128
    %1040 = vxpose.xlu0.b32.cont [13/16] 0.0, 128
    %1041 = vxpose.xlu0.b32.cont [14/16] 0.0, 128
    %1042 = vxpose.xlu0.b32.cont [15/16] 0.0, 128
    %1043 = vxpose.xlu0.b32.end [16/16] 0.0, 128
    %v1044 = vpop.trf.xlu0
    %v1045 = vpop.trf.xlu0
    %v1046 = vpop.trf.xlu0
    %v1047 = vpop.trf.xlu0
    %v1048 = vpop.trf.xlu0
    %v1049 = vpop.trf.xlu0
    %v1050 = vpop.trf.xlu0
    %v1051 = vpop.trf.xlu0
    %v1052 = vpop.trf.xlu0
    %v1053 = vpop.trf.xlu0
    %v1054 = vpop.trf.xlu0
    %v1055 = vpop.trf.xlu0
    %v1056 = vpop.trf.xlu0
    %v1057 = vpop.trf.xlu0
    %v1058 = vpop.trf.xlu0
    %v1059 = vpop.trf.xlu0
    %1060 = vset.pattern.permute.xlu0 2
    %1061 = vperm.xlu0 %1060, %v461
    %v1062 = vpop.permute.xlu0 %1061
    %1064 = vset.pattern.permute.xlu0 2
    %1065 = vperm.xlu0 %1064, %v466
    %v1066 = vpop.permute.xlu0 %1065
    %v1068 = vlaneseq
    %v1069 = vshrl.u32 %v1068, 7
    %v1070 = vsub.s32 0, %v1069
    %v1071 = vrot.slane %v1044, %v1070
    %v1072 = vadd.f32 %v1062, %v1071
    %v1073 = vadd.f32 %v1066, %v1071
    %vm1074 = vcmp.gt.f32.partialorder %v1072, 0.0
    %vm1075 = vcmp.gt.f32.partialorder %v1073, 0.0
    %v1076 = vmul.f32 %v1072, 0.2
    %v1077 = vmul.f32 %v1073, 0.2
    %v1078 = vsel %vm1074, %v1072, %v1076
    %v1079 = vsel %vm1075, %v1073, %v1077
    %v1080 = vsel %vm35, %v1078, -9e+16
    %v1081 = vsel %vm36, %v1079, -9e+16
    %v1082 = vsel %vm531, %v1080, -inf
    %1083 = vmax.xlane.f32.xlu0 %v1082
    %v1084 = vpop.xlane.xlu0 %1083
    %v1085 = vsel %vm531, %v1081, -inf
    %1086 = vmax.xlane.f32.xlu0 %v1085
    %v1087 = vpop.xlane.xlu0 %1086
    %v1088 = vsub.f32 %v1080, %v1084
    %v1089 = vsub.f32 %v1081, %v1087
    %v1090 = vmul.f32 %v1088, 1.442695
    %v1091 = vpow.pop %v1090
    %v1092 = vmul.f32 %v1089, 1.442695
    %v1093 = vpow.pop %v1092
    %v1094 = vsel %vm531, %v1091, 0.0
    %1095 = vadd.xlane.f32.xlu0 %v1094
    %v1096 = vpop.xlane.xlu0 %1095
    %v1097 = vsel %vm531, %v1093, 0.0
    %1098 = vadd.xlane.f32.xlu0 %v1097
    %v1099 = vpop.xlane.xlu0 %1098
    %v1100 = vrcp.pop %v1096
    %v1101 = vrcp.pop %v1099
    %v1102 = vmul.f32 %v1096, %v1100
    %v1103 = vmul.f32 %v1099, %v1101
    %v1104 = vsub.f32 2.0, %v1102
    %v1105 = vsub.f32 2.0, %v1103
    %v1106 = vmul.f32 %v1100, %v1104
    %v1107 = vmul.f32 %v1101, %v1105
    %v1108 = vmul.f32 %v1091, %v1106
    %v1109 = vmul.f32 %v1093, %v1107
    %s1110 = scalar_lea.vmem %s7, 32
    %1111 = vst.msk [vmem:[%s1110] sm:$0xff] %vm531, %v1108
    %1112 = vst.msk [vmem:[%s1110 + $0x8] sm:$0xff] %vm531, %v1109
    %v1114 = vsel %vm531, %v1108, 0
    %v1117 = vsel %vm531, %v1109, 0
    %1119 = vmatprep.subr.mxu0 0.0
    %1120 = vmatpush1.msra.mxu0 %v245
    %1121 = vmatprep.subr.mxu0 0.0
    %1122 = vmatpush1.msra.mxu0 %v251
    %1123 = vmatprep.subr.mxu0 0.0
    %1124 = vmatpush1.msra.mxu0 0.0
    %1125 = vmatprep.subr.mxu0 0.0
    %1126 = vmatpush1.msra.mxu0 0.0
    %1127 = vmatprep.subr.mxu0 0.0
    %1128 = vmatpush1.msra.mxu0 0.0
    %1129 = vmatprep.subr.mxu0 0.0
    %1130 = vmatpush1.msra.mxu0 0.0
    %1131 = vmatprep.subr.mxu0 0.0
    %1132 = vmatpush1.msra.mxu0 0.0
    %1133 = vmatprep.subr.mxu0 0.0
    %1134 = vmatpush1.msra.mxu0 0.0
    %1135 = vmatprep.subr.mxu0 0.0
    %1136 = vmatpush1.msra.mxu0 0.0
    %1137 = vmatprep.subr.mxu0 0.0
    %1138 = vmatpush1.msra.mxu0 0.0
    %1139 = vmatprep.subr.mxu0 0.0
    %1140 = vmatpush1.msra.mxu0 0.0
    %1141 = vmatprep.subr.mxu0 0.0
    %1142 = vmatpush1.msra.mxu0 0.0
    %1143 = vmatprep.subr.mxu0 0.0
    %1144 = vmatpush1.msra.mxu0 0.0
    %1145 = vmatprep.subr.mxu0 0.0
    %1146 = vmatpush1.msra.mxu0 0.0
    %1147 = vmatprep.subr.mxu0 0.0
    %1148 = vmatpush1.msra.mxu0 0.0
    %1149 = vmatprep.subr.mxu0 0.0
    %1150 = vmatpush1.msra.mxu0 0.0
    %1151 = vmatprep.subr.mxu0 0.0
    %1152 = vmatpush1.msra.mxu0 0.0
    %1153 = vmatprep.subr.mxu0 0.0
    %1154 = vmatpush1.msra.mxu0 0.0
    %1155 = vmatprep.subr.mxu0 0.0
    %1156 = vmatpush1.msra.mxu0 0.0
    %1157 = vmatprep.subr.mxu0 0.0
    %1158 = vmatpush1.msra.mxu0 0.0
    %1159 = vmatprep.subr.mxu0 0.0
    %1160 = vmatpush1.msra.mxu0 0.0
    %1161 = vmatprep.subr.mxu0 0.0
    %1162 = vmatpush1.msra.mxu0 0.0
    %1163 = vmatprep.subr.mxu0 0.0
    %1164 = vmatpush1.msra.mxu0 0.0
    %1165 = vmatprep.subr.mxu0 0.0
    %1166 = vmatpush1.msra.mxu0 0.0
    %1167 = vmatprep.subr.mxu0 0.0
    %1168 = vmatpush1.msra.mxu0 0.0
    %1169 = vmatprep.subr.mxu0 0.0
    %1170 = vmatpush1.msra.mxu0 0.0
    %1171 = vmatprep.subr.mxu0 0.0
    %1172 = vmatpush1.msra.mxu0 0.0
    %1173 = vmatprep.subr.mxu0 0.0
    %1174 = vmatpush1.msra.mxu0 0.0
    %1175 = vmatprep.subr.mxu0 0.0
    %1176 = vmatpush1.msra.mxu0 0.0
    %1177 = vmatprep.subr.mxu0 0.0
    %1178 = vmatpush1.msra.mxu0 0.0
    %1179 = vmatprep.subr.mxu0 0.0
    %1180 = vmatpush1.msra.mxu0 0.0
    %1181 = vmatprep.subr.mxu0 0.0
    %1182 = vmatpush1.msra.mxu0 0.0
    %1183 = vmatprep.mubr.f32.mxu0 0.0
    %1184 = vmatmul.mubr.f32.gmra.mrb[0].mxu0 %v1114
    %v1185 = vpop.f32.mrb[0].mxu0
    %v1186 = vadd.f32 0.0, %v1185
    %v1187 = vpop.f32.mrb[0].mxu0
    %1188 = vmatprep.mubr.f32.mxu0 0.0
    %1189 = vmatmul.mubr.f32.gmra.mrb[0].mxu0 %v1117
    %v1190 = vpop.f32.mrb[0].mxu0
    %v1191 = vadd.f32 0.0, %v1190
    %v1192 = vpop.f32.mrb[0].mxu0
    %1193 = vdwg.mxu0
    %vm1194 = vcmp.gt.f32.partialorder %v1186, 0.0
    %vm1195 = vcmp.gt.f32.partialorder %v1191, 0.0
    %v1196 = vmin.f32 %v1186, 0.0
    %v1197 = vmin.f32 %v1191, 0.0
    %v1198 = vmul.f32 %v1196, 1.442695
    %v1199 = vpow.pop %v1198
    %v1200 = vmul.f32 %v1197, 1.442695
    %v1201 = vpow.pop %v1200
    %v1202 = vsub.f32 %v1199, 1.0
    %v1203 = vsub.f32 %v1201, 1.0
    %v1204 = vsel %vm1194, %v1186, %v1202
    %v1205 = vsel %vm1195, %v1191, %v1203
    %s1206 = scalar_lea.vmem %s4, 256
    %v1207 = vld [vmem:[%s1206] sm:$0xff]
    %v1208 = vld [vmem:[%s1206 + $0x8] sm:$0xff]
    %v1209 = vld [vmem:[%s1206 + $0x10] sm:$0xff]
    %v1210 = vld [vmem:[%s1206 + $0x18] sm:$0xff]
    %v1211 = vld [vmem:[%s1206 + $0x20] sm:$0xff]
    %v1212 = vld [vmem:[%s1206 + $0x28] sm:$0xff]
    %v1213 = vld [vmem:[%s1206 + $0x30] sm:$0xff]
    %v1214 = vld [vmem:[%s1206 + $0x38] sm:$0xff]
    %v1215 = vld [vmem:[%s1206 + $0x40] sm:$0xff]
    %v1216 = vld [vmem:[%s1206 + $0x48] sm:$0xff]
    %v1217 = vld [vmem:[%s1206 + $0x50] sm:$0xff]
    %v1218 = vld [vmem:[%s1206 + $0x58] sm:$0xff]
    %v1219 = vld [vmem:[%s1206 + $0x60] sm:$0xff]
    %v1220 = vld [vmem:[%s1206 + $0x68] sm:$0xff]
    %v1221 = vld [vmem:[%s1206 + $0x70] sm:$0xff]
    %v1222 = vld [vmem:[%s1206 + $0x78] sm:$0xff]
    %1223 = vmatprep.subr.mxu0 0.0
    %1224 = vmatpush1.msra.mxu0 %v1207
    %1225 = vmatprep.subr.mxu0 0.0
    %1226 = vmatpush1.msra.mxu0 %v1208
    %1227 = vmatprep.subr.mxu0 0.0
    %1228 = vmatpush1.msra.mxu0 %v1209
    %1229 = vmatprep.subr.mxu0 0.0
    %1230 = vmatpush1.msra.mxu0 %v1210
    %1231 = vmatprep.subr.mxu0 0.0
    %1232 = vmatpush1.msra.mxu0 %v1211
    %1233 = vmatprep.subr.mxu0 0.0
    %1234 = vmatpush1.msra.mxu0 %v1212
    %1235 = vmatprep.subr.mxu0 0.0
    %1236 = vmatpush1.msra.mxu0 %v1213
    %1237 = vmatprep.subr.mxu0 0.0
    %1238 = vmatpush1.msra.mxu0 %v1214
    %1239 = vmatprep.subr.mxu0 0.0
    %1240 = vmatpush1.msra.mxu0 %v1215
    %1241 = vmatprep.subr.mxu0 0.0
    %1242 = vmatpush1.msra.mxu0 %v1216
    %1243 = vmatprep.subr.mxu0 0.0
    %1244 = vmatpush1.msra.mxu0 %v1217
    %1245 = vmatprep.subr.mxu0 0.0
    %1246 = vmatpush1.msra.mxu0 %v1218
    %1247 = vmatprep.subr.mxu0 0.0
    %1248 = vmatpush1.msra.mxu0 %v1219
    %1249 = vmatprep.subr.mxu0 0.0
    %1250 = vmatpush1.msra.mxu0 %v1220
    %1251 = vmatprep.subr.mxu0 0.0
    %1252 = vmatpush1.msra.mxu0 %v1221
    %1253 = vmatprep.subr.mxu0 0.0
    %1254 = vmatpush1.msra.mxu0 %v1222
    %1255 = vmatprep.subr.mxu0 0.0
    %1256 = vmatpush1.msra.mxu0 0.0
    %1257 = vmatprep.subr.mxu0 0.0
    %1258 = vmatpush1.msra.mxu0 0.0
    %1259 = vmatprep.subr.mxu0 0.0
    %1260 = vmatpush1.msra.mxu0 0.0
    %1261 = vmatprep.subr.mxu0 0.0
    %1262 = vmatpush1.msra.mxu0 0.0
    %1263 = vmatprep.subr.mxu0 0.0
    %1264 = vmatpush1.msra.mxu0 0.0
    %1265 = vmatprep.subr.mxu0 0.0
    %1266 = vmatpush1.msra.mxu0 0.0
    %1267 = vmatprep.subr.mxu0 0.0
    %1268 = vmatpush1.msra.mxu0 0.0
    %1269 = vmatprep.subr.mxu0 0.0
    %1270 = vmatpush1.msra.mxu0 0.0
    %1271 = vmatprep.subr.mxu0 0.0
    %1272 = vmatpush1.msra.mxu0 0.0
    %1273 = vmatprep.subr.mxu0 0.0
    %1274 = vmatpush1.msra.mxu0 0.0
    %1275 = vmatprep.subr.mxu0 0.0
    %1276 = vmatpush1.msra.mxu0 0.0
    %1277 = vmatprep.subr.mxu0 0.0
    %1278 = vmatpush1.msra.mxu0 0.0
    %1279 = vmatprep.subr.mxu0 0.0
    %1280 = vmatpush1.msra.mxu0 0.0
    %1281 = vmatprep.subr.mxu0 0.0
    %1282 = vmatpush1.msra.mxu0 0.0
    %1283 = vmatprep.subr.mxu0 0.0
    %1284 = vmatpush1.msra.mxu0 0.0
    %1285 = vmatprep.subr.mxu0 0.0
    %1286 = vmatpush1.msra.mxu0 0.0
    %1287 = vmatprep.mubr.f32.mxu0 0.0
    %1288 = vmatmul.mubr.f32.gmra.mrb[0].mxu0 %v1204
    %v1289 = vpop.f32.mrb[0].mxu0
    %v1290 = vadd.f32 0.0, %v1289
    %v1291 = vpop.f32.mrb[0].mxu0
    %1292 = vmatprep.mubr.f32.mxu0 0.0
    %1293 = vmatmul.mubr.f32.gmra.mrb[0].mxu0 %v1205
    %v1294 = vpop.f32.mrb[0].mxu0
    %v1295 = vadd.f32 0.0, %v1294
    %v1296 = vpop.f32.mrb[0].mxu0
    %1297 = vdwg.mxu0
    %v1298 = vadd.f32 %v1014, %v1290
    %v1299 = vadd.f32 %v1019, %v1295
    %1300 = vrot.lane.b32.xlu0 %v461, 121
    %v1301 = vpop.permute.xlu0 %1300
    %1302 = vrot.lane.b32.xlu0 %v466, 121
    %v1303 = vpop.permute.xlu0 %1302
    %1306 = vxpose.xlu0.b32.start [1/16] %v1301, 128
    %1307 = vxpose.xlu0.b32.cont [2/16] %v1303, 128
    %1308 = vxpose.xlu0.b32.cont [3/16] 0.0, 128
    %1309 = vxpose.xlu0.b32.cont [4/16] 0.0, 128
    %1310 = vxpose.xlu0.b32.cont [5/16] 0.0, 128
    %1311 = vxpose.xlu0.b32.cont [6/16] 0.0, 128
    %1312 = vxpose.xlu0.b32.cont [7/16] 0.0, 128
    %1313 = vxpose.xlu0.b32.cont [8/16] 0.0, 128
    %1314 = vxpose.xlu0.b32.cont [9/16] 0.0, 128
    %1315 = vxpose.xlu0.b32.cont [10/16] 0.0, 128
    %1316 = vxpose.xlu0.b32.cont [11/16] 0.0, 128
    %1317 = vxpose.xlu0.b32.cont [12/16] 0.0, 128
    %1318 = vxpose.xlu0.b32.cont [13/16] 0.0, 128
    %1319 = vxpose.xlu0.b32.cont [14/16] 0.0, 128
    %1320 = vxpose.xlu0.b32.cont [15/16] 0.0, 128
    %1321 = vxpose.xlu0.b32.end [16/16] 0.0, 128
    %v1322 = vpop.trf.xlu0
    %v1323 = vpop.trf.xlu0
    %v1324 = vpop.trf.xlu0
    %v1325 = vpop.trf.xlu0
    %v1326 = vpop.trf.xlu0
    %v1327 = vpop.trf.xlu0
    %v1328 = vpop.trf.xlu0
    %v1329 = vpop.trf.xlu0
    %v1330 = vpop.trf.xlu0
    %v1331 = vpop.trf.xlu0
    %v1332 = vpop.trf.xlu0
    %v1333 = vpop.trf.xlu0
    %v1334 = vpop.trf.xlu0
    %v1335 = vpop.trf.xlu0
    %v1336 = vpop.trf.xlu0
    %v1337 = vpop.trf.xlu0
    %1338 = vset.pattern.permute.xlu0 3
    %1339 = vperm.xlu0 %1338, %v461
    %v1340 = vpop.permute.xlu0 %1339
    %1342 = vset.pattern.permute.xlu0 3
    %1343 = vperm.xlu0 %1342, %v466
    %v1344 = vpop.permute.xlu0 %1343
    %v1346 = vlaneseq
    %v1347 = vshrl.u32 %v1346, 7
    %v1348 = vsub.s32 0, %v1347
    %v1349 = vrot.slane %v1322, %v1348
    %v1350 = vadd.f32 %v1340, %v1349
    %v1351 = vadd.f32 %v1344, %v1349
    %vm1352 = vcmp.gt.f32.partialorder %v1350, 0.0
    %vm1353 = vcmp.gt.f32.partialorder %v1351, 0.0
    %v1354 = vmul.f32 %v1350, 0.2
    %v1355 = vmul.f32 %v1351, 0.2
    %v1356 = vsel %vm1352, %v1350, %v1354
    %v1357 = vsel %vm1353, %v1351, %v1355
    %v1358 = vsel %vm35, %v1356, -9e+16
    %v1359 = vsel %vm36, %v1357, -9e+16
    %v1360 = vsel %vm531, %v1358, -inf
    %1361 = vmax.xlane.f32.xlu0 %v1360
    %v1362 = vpop.xlane.xlu0 %1361
    %v1363 = vsel %vm531, %v1359, -inf
    %1364 = vmax.xlane.f32.xlu0 %v1363
    %v1365 = vpop.xlane.xlu0 %1364
    %v1366 = vsub.f32 %v1358, %v1362
    %v1367 = vsub.f32 %v1359, %v1365
    %v1368 = vmul.f32 %v1366, 1.442695
    %v1369 = vpow.pop %v1368
    %v1370 = vmul.f32 %v1367, 1.442695
    %v1371 = vpow.pop %v1370
    %v1372 = vsel %vm531, %v1369, 0.0
    %1373 = vadd.xlane.f32.xlu0 %v1372
    %v1374 = vpop.xlane.xlu0 %1373
    %v1375 = vsel %vm531, %v1371, 0.0
    %1376 = vadd.xlane.f32.xlu0 %v1375
    %v1377 = vpop.xlane.xlu0 %1376
    %v1378 = vrcp.pop %v1374
    %v1379 = vrcp.pop %v1377
    %v1380 = vmul.f32 %v1374, %v1378
    %v1381 = vmul.f32 %v1377, %v1379
    %v1382 = vsub.f32 2.0, %v1380
    %v1383 = vsub.f32 2.0, %v1381
    %v1384 = vmul.f32 %v1378, %v1382
    %v1385 = vmul.f32 %v1379, %v1383
    %v1386 = vmul.f32 %v1369, %v1384
    %v1387 = vmul.f32 %v1371, %v1385
    %s1388 = scalar_lea.vmem %s7, 48
    %1389 = vst.msk [vmem:[%s1388] sm:$0xff] %vm531, %v1386
    %1390 = vst.msk [vmem:[%s1388 + $0x8] sm:$0xff] %vm531, %v1387
    %v1392 = vsel %vm531, %v1386, 0
    %v1395 = vsel %vm531, %v1387, 0
    %1397 = vmatprep.subr.mxu0 0.0
    %1398 = vmatpush1.msra.mxu0 %v247
    %1399 = vmatprep.subr.mxu0 0.0
    %1400 = vmatpush1.msra.mxu0 %v253
    %1401 = vmatprep.subr.mxu0 0.0
    %1402 = vmatpush1.msra.mxu0 0.0
    %1403 = vmatprep.subr.mxu0 0.0
    %1404 = vmatpush1.msra.mxu0 0.0
    %1405 = vmatprep.subr.mxu0 0.0
    %1406 = vmatpush1.msra.mxu0 0.0
    %1407 = vmatprep.subr.mxu0 0.0
    %1408 = vmatpush1.msra.mxu0 0.0
    %1409 = vmatprep.subr.mxu0 0.0
    %1410 = vmatpush1.msra.mxu0 0.0
    %1411 = vmatprep.subr.mxu0 0.0
    %1412 = vmatpush1.msra.mxu0 0.0
    %1413 = vmatprep.subr.mxu0 0.0
    %1414 = vmatpush1.msra.mxu0 0.0
    %1415 = vmatprep.subr.mxu0 0.0
    %1416 = vmatpush1.msra.mxu0 0.0
    %1417 = vmatprep.subr.mxu0 0.0
    %1418 = vmatpush1.msra.mxu0 0.0
    %1419 = vmatprep.subr.mxu0 0.0
    %1420 = vmatpush1.msra.mxu0 0.0
    %1421 = vmatprep.subr.mxu0 0.0
    %1422 = vmatpush1.msra.mxu0 0.0
    %1423 = vmatprep.subr.mxu0 0.0
    %1424 = vmatpush1.msra.mxu0 0.0
    %1425 = vmatprep.subr.mxu0 0.0
    %1426 = vmatpush1.msra.mxu0 0.0
    %1427 = vmatprep.subr.mxu0 0.0
    %1428 = vmatpush1.msra.mxu0 0.0
    %1429 = vmatprep.subr.mxu0 0.0
    %1430 = vmatpush1.msra.mxu0 0.0
    %1431 = vmatprep.subr.mxu0 0.0
    %1432 = vmatpush1.msra.mxu0 0.0
    %1433 = vmatprep.subr.mxu0 0.0
    %1434 = vmatpush1.msra.mxu0 0.0
    %1435 = vmatprep.subr.mxu0 0.0
    %1436 = vmatpush1.msra.mxu0 0.0
    %1437 = vmatprep.subr.mxu0 0.0
    %1438 = vmatpush1.msra.mxu0 0.0
    %1439 = vmatprep.subr.mxu0 0.0
    %1440 = vmatpush1.msra.mxu0 0.0
    %1441 = vmatprep.subr.mxu0 0.0
    %1442 = vmatpush1.msra.mxu0 0.0
    %1443 = vmatprep.subr.mxu0 0.0
    %1444 = vmatpush1.msra.mxu0 0.0
    %1445 = vmatprep.subr.mxu0 0.0
    %1446 = vmatpush1.msra.mxu0 0.0
    %1447 = vmatprep.subr.mxu0 0.0
    %1448 = vmatpush1.msra.mxu0 0.0
    %1449 = vmatprep.subr.mxu0 0.0
    %1450 = vmatpush1.msra.mxu0 0.0
    %1451 = vmatprep.subr.mxu0 0.0
    %1452 = vmatpush1.msra.mxu0 0.0
    %1453 = vmatprep.subr.mxu0 0.0
    %1454 = vmatpush1.msra.mxu0 0.0
    %1455 = vmatprep.subr.mxu0 0.0
    %1456 = vmatpush1.msra.mxu0 0.0
    %1457 = vmatprep.subr.mxu0 0.0
    %1458 = vmatpush1.msra.mxu0 0.0
    %1459 = vmatprep.subr.mxu0 0.0
    %1460 = vmatpush1.msra.mxu0 0.0
    %1461 = vmatprep.mubr.f32.mxu0 0.0
    %1462 = vmatmul.mubr.f32.gmra.mrb[0].mxu0 %v1392
    %v1463 = vpop.f32.mrb[0].mxu0
    %v1464 = vadd.f32 0.0, %v1463
    %v1465 = vpop.f32.mrb[0].mxu0
    %1466 = vmatprep.mubr.f32.mxu0 0.0
    %1467 = vmatmul.mubr.f32.gmra.mrb[0].mxu0 %v1395
    %v1468 = vpop.f32.mrb[0].mxu0
    %v1469 = vadd.f32 0.0, %v1468
    %v1470 = vpop.f32.mrb[0].mxu0
    %1471 = vdwg.mxu0
    %vm1472 = vcmp.gt.f32.partialorder %v1464, 0.0
    %vm1473 = vcmp.gt.f32.partialorder %v1469, 0.0
    %v1474 = vmin.f32 %v1464, 0.0
    %v1475 = vmin.f32 %v1469, 0.0
    %v1476 = vmul.f32 %v1474, 1.442695
    %v1477 = vpow.pop %v1476
    %v1478 = vmul.f32 %v1475, 1.442695
    %v1479 = vpow.pop %v1478
    %v1480 = vsub.f32 %v1477, 1.0
    %v1481 = vsub.f32 %v1479, 1.0
    %v1482 = vsel %vm1472, %v1464, %v1480
    %v1483 = vsel %vm1473, %v1469, %v1481
    %s1484 = scalar_lea.vmem %s4, 384
    %v1485 = vld [vmem:[%s1484] sm:$0xff]
    %v1486 = vld [vmem:[%s1484 + $0x8] sm:$0xff]
    %v1487 = vld [vmem:[%s1484 + $0x10] sm:$0xff]
    %v1488 = vld [vmem:[%s1484 + $0x18] sm:$0xff]
    %v1489 = vld [vmem:[%s1484 + $0x20] sm:$0xff]
    %v1490 = vld [vmem:[%s1484 + $0x28] sm:$0xff]
    %v1491 = vld [vmem:[%s1484 + $0x30] sm:$0xff]
    %v1492 = vld [vmem:[%s1484 + $0x38] sm:$0xff]
    %v1493 = vld [vmem:[%s1484 + $0x40] sm:$0xff]
    %v1494 = vld [vmem:[%s1484 + $0x48] sm:$0xff]
    %v1495 = vld [vmem:[%s1484 + $0x50] sm:$0xff]
    %v1496 = vld [vmem:[%s1484 + $0x58] sm:$0xff]
    %v1497 = vld [vmem:[%s1484 + $0x60] sm:$0xff]
    %v1498 = vld [vmem:[%s1484 + $0x68] sm:$0xff]
    %v1499 = vld [vmem:[%s1484 + $0x70] sm:$0xff]
    %v1500 = vld [vmem:[%s1484 + $0x78] sm:$0xff]
    %1501 = vmatprep.subr.mxu0 0.0
    %1502 = vmatpush1.msra.mxu0 %v1485
    %1503 = vmatprep.subr.mxu0 0.0
    %1504 = vmatpush1.msra.mxu0 %v1486
    %1505 = vmatprep.subr.mxu0 0.0
    %1506 = vmatpush1.msra.mxu0 %v1487
    %1507 = vmatprep.subr.mxu0 0.0
    %1508 = vmatpush1.msra.mxu0 %v1488
    %1509 = vmatprep.subr.mxu0 0.0
    %1510 = vmatpush1.msra.mxu0 %v1489
    %1511 = vmatprep.subr.mxu0 0.0
    %1512 = vmatpush1.msra.mxu0 %v1490
    %1513 = vmatprep.subr.mxu0 0.0
    %1514 = vmatpush1.msra.mxu0 %v1491
    %1515 = vmatprep.subr.mxu0 0.0
    %1516 = vmatpush1.msra.mxu0 %v1492
    %1517 = vmatprep.subr.mxu0 0.0
    %1518 = vmatpush1.msra.mxu0 %v1493
    %1519 = vmatprep.subr.mxu0 0.0
    %1520 = vmatpush1.msra.mxu0 %v1494
    %1521 = vmatprep.subr.mxu0 0.0
    %1522 = vmatpush1.msra.mxu0 %v1495
    %1523 = vmatprep.subr.mxu0 0.0
    %1524 = vmatpush1.msra.mxu0 %v1496
    %1525 = vmatprep.subr.mxu0 0.0
    %1526 = vmatpush1.msra.mxu0 %v1497
    %1527 = vmatprep.subr.mxu0 0.0
    %1528 = vmatpush1.msra.mxu0 %v1498
    %1529 = vmatprep.subr.mxu0 0.0
    %1530 = vmatpush1.msra.mxu0 %v1499
    %1531 = vmatprep.subr.mxu0 0.0
    %1532 = vmatpush1.msra.mxu0 %v1500
    %1533 = vmatprep.subr.mxu0 0.0
    %1534 = vmatpush1.msra.mxu0 0.0
    %1535 = vmatprep.subr.mxu0 0.0
    %1536 = vmatpush1.msra.mxu0 0.0
    %1537 = vmatprep.subr.mxu0 0.0
    %1538 = vmatpush1.msra.mxu0 0.0
    %1539 = vmatprep.subr.mxu0 0.0
    %1540 = vmatpush1.msra.mxu0 0.0
    %1541 = vmatprep.subr.mxu0 0.0
    %1542 = vmatpush1.msra.mxu0 0.0
    %1543 = vmatprep.subr.mxu0 0.0
    %1544 = vmatpush1.msra.mxu0 0.0
    %1545 = vmatprep.subr.mxu0 0.0
    %1546 = vmatpush1.msra.mxu0 0.0
    %1547 = vmatprep.subr.mxu0 0.0
    %1548 = vmatpush1.msra.mxu0 0.0
    %1549 = vmatprep.subr.mxu0 0.0
    %1550 = vmatpush1.msra.mxu0 0.0
    %1551 = vmatprep.subr.mxu0 0.0
    %1552 = vmatpush1.msra.mxu0 0.0
    %1553 = vmatprep.subr.mxu0 0.0
    %1554 = vmatpush1.msra.mxu0 0.0
    %1555 = vmatprep.subr.mxu0 0.0
    %1556 = vmatpush1.msra.mxu0 0.0
    %1557 = vmatprep.subr.mxu0 0.0
    %1558 = vmatpush1.msra.mxu0 0.0
    %1559 = vmatprep.subr.mxu0 0.0
    %1560 = vmatpush1.msra.mxu0 0.0
    %1561 = vmatprep.subr.mxu0 0.0
    %1562 = vmatpush1.msra.mxu0 0.0
    %1563 = vmatprep.subr.mxu0 0.0
    %1564 = vmatpush1.msra.mxu0 0.0
    %1565 = vmatprep.mubr.f32.mxu0 0.0
    %1566 = vmatmul.mubr.f32.gmra.mrb[0].mxu0 %v1482
    %v1567 = vpop.f32.mrb[0].mxu0
    %v1568 = vadd.f32 0.0, %v1567
    %v1569 = vpop.f32.mrb[0].mxu0
    %1570 = vmatprep.mubr.f32.mxu0 0.0
    %1571 = vmatmul.mubr.f32.gmra.mrb[0].mxu0 %v1483
    %v1572 = vpop.f32.mrb[0].mxu0
    %v1573 = vadd.f32 0.0, %v1572
    %v1574 = vpop.f32.mrb[0].mxu0
    %1575 = vdwg.mxu0
    %v1576 = vadd.f32 %v1298, %v1568
    %v1577 = vadd.f32 %v1299, %v1573
    %v1578 = vld [vmem:[%s5] sm:$0xff]
    %v1579 = vld [vmem:[%s5 + $0x8] sm:$0xff]
    %v1580 = vld [vmem:[%s5 + $0x10] sm:$0xff]
    %v1581 = vld [vmem:[%s5 + $0x18] sm:$0xff]
    %v1582 = vld [vmem:[%s5 + $0x20] sm:$0xff]
    %v1583 = vld [vmem:[%s5 + $0x28] sm:$0xff]
    %v1584 = vld [vmem:[%s5 + $0x30] sm:$0xff]
    %v1585 = vld [vmem:[%s5 + $0x38] sm:$0xff]
    %v1586 = vld [vmem:[%s5 + $0x40] sm:$0xff]
    %v1587 = vld [vmem:[%s5 + $0x48] sm:$0xff]
    %v1588 = vld [vmem:[%s5 + $0x50] sm:$0xff]
    %v1589 = vld [vmem:[%s5 + $0x58] sm:$0xff]
    %v1590 = vld [vmem:[%s5 + $0x60] sm:$0xff]
    %v1591 = vld [vmem:[%s5 + $0x68] sm:$0xff]
    %v1592 = vld [vmem:[%s5 + $0x70] sm:$0xff]
    %v1593 = vld [vmem:[%s5 + $0x78] sm:$0xff]
    %1594 = vmatprep.subr.mxu0 0.0
    %1595 = vmatpush1.msra.mxu0 %v1578
    %1596 = vmatprep.subr.mxu0 0.0
    %1597 = vmatpush1.msra.mxu0 %v1579
    %1598 = vmatprep.subr.mxu0 0.0
    %1599 = vmatpush1.msra.mxu0 %v1580
    %1600 = vmatprep.subr.mxu0 0.0
    %1601 = vmatpush1.msra.mxu0 %v1581
    %1602 = vmatprep.subr.mxu0 0.0
    %1603 = vmatpush1.msra.mxu0 %v1582
    %1604 = vmatprep.subr.mxu0 0.0
    %1605 = vmatpush1.msra.mxu0 %v1583
    %1606 = vmatprep.subr.mxu0 0.0
    %1607 = vmatpush1.msra.mxu0 %v1584
    %1608 = vmatprep.subr.mxu0 0.0
    %1609 = vmatpush1.msra.mxu0 %v1585
    %1610 = vmatprep.subr.mxu0 0.0
    %1611 = vmatpush1.msra.mxu0 %v1586
    %1612 = vmatprep.subr.mxu0 0.0
    %1613 = vmatpush1.msra.mxu0 %v1587
    %1614 = vmatprep.subr.mxu0 0.0
    %1615 = vmatpush1.msra.mxu0 %v1588
    %1616 = vmatprep.subr.mxu0 0.0
    %1617 = vmatpush1.msra.mxu0 %v1589
    %1618 = vmatprep.subr.mxu0 0.0
    %1619 = vmatpush1.msra.mxu0 %v1590
    %1620 = vmatprep.subr.mxu0 0.0
    %1621 = vmatpush1.msra.mxu0 %v1591
    %1622 = vmatprep.subr.mxu0 0.0
    %1623 = vmatpush1.msra.mxu0 %v1592
    %1624 = vmatprep.subr.mxu0 0.0
    %1625 = vmatpush1.msra.mxu0 %v1593
    %1626 = vmatprep.subr.mxu0 0.0
    %1627 = vmatpush1.msra.mxu0 0.0
    %1628 = vmatprep.subr.mxu0 0.0
    %1629 = vmatpush1.msra.mxu0 0.0
    %1630 = vmatprep.subr.mxu0 0.0
    %1631 = vmatpush1.msra.mxu0 0.0
    %1632 = vmatprep.subr.mxu0 0.0
    %1633 = vmatpush1.msra.mxu0 0.0
    %1634 = vmatprep.subr.mxu0 0.0
    %1635 = vmatpush1.msra.mxu0 0.0
    %1636 = vmatprep.subr.mxu0 0.0
    %1637 = vmatpush1.msra.mxu0 0.0
    %1638 = vmatprep.subr.mxu0 0.0
    %1639 = vmatpush1.msra.mxu0 0.0
    %1640 = vmatprep.subr.mxu0 0.0
    %1641 = vmatpush1.msra.mxu0 0.0
    %1642 = vmatprep.subr.mxu0 0.0
    %1643 = vmatpush1.msra.mxu0 0.0
    %1644 = vmatprep.subr.mxu0 0.0
    %1645 = vmatpush1.msra.mxu0 0.0
    %1646 = vmatprep.subr.mxu0 0.0
    %1647 = vmatpush1.msra.mxu0 0.0
    %1648 = vmatprep.subr.mxu0 0.0
    %1649 = vmatpush1.msra.mxu0 0.0
    %1650 = vmatprep.subr.mxu0 0.0
    %1651 = vmatpush1.msra.mxu0 0.0
    %1652 = vmatprep.subr.mxu0 0.0
    %1653 = vmatpush1.msra.mxu0 0.0
    %1654 = vmatprep.subr.mxu0 0.0
    %1655 = vmatpush1.msra.mxu0 0.0
    %1656 = vmatprep.subr.mxu0 0.0
    %1657 = vmatpush1.msra.mxu0 0.0
    %1658 = vmatprep.mubr.f32.mxu0 0.0
    %1659 = vmatmul.mubr.f32.gmra.mrb[0].mxu0 %v1576
    %v1660 = vpop.f32.mrb[0].mxu0
    %v1661 = vadd.f32 0.0, %v1660
    %v1662 = vpop.f32.mrb[0].mxu0
    %1663 = vmatprep.mubr.f32.mxu0 0.0
    %1664 = vmatmul.mubr.f32.gmra.mrb[0].mxu0 %v1577
    %v1665 = vpop.f32.mrb[0].mxu0
    %v1666 = vadd.f32 0.0, %v1665
    %v1667 = vpop.f32.mrb[0].mxu0
    %1668 = vdwg.mxu0
    %1671 = vrot.lane.b32.xlu0 %v1661, 127
    %v1672 = vpop.permute.xlu0 %1671
    %1673 = vrot.lane.b32.xlu0 %v1666, 127
    %v1674 = vpop.permute.xlu0 %1673
    %1677 = vxpose.xlu0.b32.start [1/16] %v1672, 128
    %1678 = vxpose.xlu0.b32.cont [2/16] %v1674, 128
    %1679 = vxpose.xlu0.b32.cont [3/16] 0.0, 128
    %1680 = vxpose.xlu0.b32.cont [4/16] 0.0, 128
    %1681 = vxpose.xlu0.b32.cont [5/16] 0.0, 128
    %1682 = vxpose.xlu0.b32.cont [6/16] 0.0, 128
    %1683 = vxpose.xlu0.b32.cont [7/16] 0.0, 128
    %1684 = vxpose.xlu0.b32.cont [8/16] 0.0, 128
    %1685 = vxpose.xlu0.b32.cont [9/16] 0.0, 128
    %1686 = vxpose.xlu0.b32.cont [10/16] 0.0, 128
    %1687 = vxpose.xlu0.b32.cont [11/16] 0.0, 128
    %1688 = vxpose.xlu0.b32.cont [12/16] 0.0, 128
    %1689 = vxpose.xlu0.b32.cont [13/16] 0.0, 128
    %1690 = vxpose.xlu0.b32.cont [14/16] 0.0, 128
    %1691 = vxpose.xlu0.b32.cont [15/16] 0.0, 128
    %1692 = vxpose.xlu0.b32.end [16/16] 0.0, 128
    %v1693 = vpop.trf.xlu0
    %v1694 = vpop.trf.xlu0
    %v1695 = vpop.trf.xlu0
    %v1696 = vpop.trf.xlu0
    %v1697 = vpop.trf.xlu0
    %v1698 = vpop.trf.xlu0
    %v1699 = vpop.trf.xlu0
    %v1700 = vpop.trf.xlu0
    %v1701 = vpop.trf.xlu0
    %v1702 = vpop.trf.xlu0
    %v1703 = vpop.trf.xlu0
    %v1704 = vpop.trf.xlu0
    %v1705 = vpop.trf.xlu0
    %v1706 = vpop.trf.xlu0
    %v1707 = vpop.trf.xlu0
    %v1708 = vpop.trf.xlu0
    %1709 = vset.pattern.permute.xlu0 0
    %1710 = vperm.xlu0 %1709, %v1661
    %v1711 = vpop.permute.xlu0 %1710
    %1713 = vset.pattern.permute.xlu0 0
    %1714 = vperm.xlu0 %1713, %v1666
    %v1715 = vpop.permute.xlu0 %1714
    %v1717 = vlaneseq
    %v1718 = vshrl.u32 %v1717, 7
    %v1719 = vsub.s32 0, %v1718
    %v1720 = vrot.slane %v1693, %v1719
    %v1721 = vadd.f32 %v1711, %v1720
    %v1722 = vadd.f32 %v1715, %v1720
    %vm1723 = vcmp.gt.f32.partialorder %v1721, 0.0
    %vm1724 = vcmp.gt.f32.partialorder %v1722, 0.0
    %v1725 = vmul.f32 %v1721, 0.2
    %v1726 = vmul.f32 %v1722, 0.2
    %v1727 = vsel %vm1723, %v1721, %v1725
    %v1728 = vsel %vm1724, %v1722, %v1726
    %v1729 = vsel %vm35, %v1727, -9e+16
    %v1730 = vsel %vm36, %v1728, -9e+16
    %v1731 = vsel %vm531, %v1729, -inf
    %1732 = vmax.xlane.f32.xlu0 %v1731
    %v1733 = vpop.xlane.xlu0 %1732
    %v1734 = vsel %vm531, %v1730, -inf
    %1735 = vmax.xlane.f32.xlu0 %v1734
    %v1736 = vpop.xlane.xlu0 %1735
    %v1737 = vsub.f32 %v1729, %v1733
    %v1738 = vsub.f32 %v1730, %v1736
    %v1739 = vmul.f32 %v1737, 1.442695
    %v1740 = vpow.pop %v1739
    %v1741 = vmul.f32 %v1738, 1.442695
    %v1742 = vpow.pop %v1741
    %v1743 = vsel %vm531, %v1740, 0.0
    %1744 = vadd.xlane.f32.xlu0 %v1743
    %v1745 = vpop.xlane.xlu0 %1744
    %v1746 = vsel %vm531, %v1742, 0.0
    %1747 = vadd.xlane.f32.xlu0 %v1746
    %v1748 = vpop.xlane.xlu0 %1747
    %v1749 = vrcp.pop %v1745
    %v1750 = vrcp.pop %v1748
    %v1751 = vmul.f32 %v1745, %v1749
    %v1752 = vmul.f32 %v1748, %v1750
    %v1753 = vsub.f32 2.0, %v1751
    %v1754 = vsub.f32 2.0, %v1752
    %v1755 = vmul.f32 %v1749, %v1753
    %v1756 = vmul.f32 %v1750, %v1754
    %v1757 = vmul.f32 %v1740, %v1755
    %v1758 = vmul.f32 %v1742, %v1756
    %1759 = vst.msk [vmem:[#allocation2] sm:$0xff] %vm531, %v1757
    %1760 = vst.msk [vmem:[#allocation2 + $0x8] sm:$0xff] %vm531, %v1758
    %v1762 = vsel %vm531, %v1757, 0
    %v1765 = vsel %vm531, %v1758, 0
    %1767 = vmatprep.subr.mxu0 0.0
    %1768 = vmatpush1.msra.mxu0 %v1576
    %1769 = vmatprep.subr.mxu0 0.0
    %1770 = vmatpush1.msra.mxu0 %v1577
    %1771 = vmatprep.subr.mxu0 0.0
    %1772 = vmatpush1.msra.mxu0 0.0
    %1773 = vmatprep.subr.mxu0 0.0
    %1774 = vmatpush1.msra.mxu0 0.0
    %1775 = vmatprep.subr.mxu0 0.0
    %1776 = vmatpush1.msra.mxu0 0.0
    %1777 = vmatprep.subr.mxu0 0.0
    %1778 = vmatpush1.msra.mxu0 0.0
    %1779 = vmatprep.subr.mxu0 0.0
    %1780 = vmatpush1.msra.mxu0 0.0
    %1781 = vmatprep.subr.mxu0 0.0
    %1782 = vmatpush1.msra.mxu0 0.0
    %1783 = vmatprep.subr.mxu0 0.0
    %1784 = vmatpush1.msra.mxu0 0.0
    %1785 = vmatprep.subr.mxu0 0.0
    %1786 = vmatpush1.msra.mxu0 0.0
    %1787 = vmatprep.subr.mxu0 0.0
    %1788 = vmatpush1.msra.mxu0 0.0
    %1789 = vmatprep.subr.mxu0 0.0
    %1790 = vmatpush1.msra.mxu0 0.0
    %1791 = vmatprep.subr.mxu0 0.0
    %1792 = vmatpush1.msra.mxu0 0.0
    %1793 = vmatprep.subr.mxu0 0.0
    %1794 = vmatpush1.msra.mxu0 0.0
    %1795 = vmatprep.subr.mxu0 0.0
    %1796 = vmatpush1.msra.mxu0 0.0
    %1797 = vmatprep.subr.mxu0 0.0
    %1798 = vmatpush1.msra.mxu0 0.0
    %1799 = vmatprep.subr.mxu0 0.0
    %1800 = vmatpush1.msra.mxu0 0.0
    %1801 = vmatprep.subr.mxu0 0.0
    %1802 = vmatpush1.msra.mxu0 0.0
    %1803 = vmatprep.subr.mxu0 0.0
    %1804 = vmatpush1.msra.mxu0 0.0
    %1805 = vmatprep.subr.mxu0 0.0
    %1806 = vmatpush1.msra.mxu0 0.0
    %1807 = vmatprep.subr.mxu0 0.0
    %1808 = vmatpush1.msra.mxu0 0.0
    %1809 = vmatprep.subr.mxu0 0.0
    %1810 = vmatpush1.msra.mxu0 0.0
    %1811 = vmatprep.subr.mxu0 0.0
    %1812 = vmatpush1.msra.mxu0 0.0
    %1813 = vmatprep.subr.mxu0 0.0
    %1814 = vmatpush1.msra.mxu0 0.0
    %1815 = vmatprep.subr.mxu0 0.0
    %1816 = vmatpush1.msra.mxu0 0.0
    %1817 = vmatprep.subr.mxu0 0.0
    %1818 = vmatpush1.msra.mxu0 0.0
    %1819 = vmatprep.subr.mxu0 0.0
    %1820 = vmatpush1.msra.mxu0 0.0
    %1821 = vmatprep.subr.mxu0 0.0
    %1822 = vmatpush1.msra.mxu0 0.0
    %1823 = vmatprep.subr.mxu0 0.0
    %1824 = vmatpush1.msra.mxu0 0.0
    %1825 = vmatprep.subr.mxu0 0.0
    %1826 = vmatpush1.msra.mxu0 0.0
    %1827 = vmatprep.subr.mxu0 0.0
    %1828 = vmatpush1.msra.mxu0 0.0
    %1829 = vmatprep.subr.mxu0 0.0
    %1830 = vmatpush1.msra.mxu0 0.0
    %1831 = vmatprep.mubr.f32.mxu0 0.0
    %1832 = vmatmul.mubr.f32.gmra.mrb[0].mxu0 %v1762
    %v1833 = vpop.f32.mrb[0].mxu0
    %v1834 = vadd.f32 0.0, %v1833
    %v1835 = vpop.f32.mrb[0].mxu0
    %1836 = vmatprep.mubr.f32.mxu0 0.0
    %1837 = vmatmul.mubr.f32.gmra.mrb[0].mxu0 %v1765
    %v1838 = vpop.f32.mrb[0].mxu0
    %v1839 = vadd.f32 0.0, %v1838
    %v1840 = vpop.f32.mrb[0].mxu0
    %1841 = vdwg.mxu0
    %v1842 = vlaneseq
    %v1843 = vand.u32 %v1842, 127
    %vm1844 = vcmp.lt.s32.totalorder %v1843, 4
    %v1845 = vsel %vm1844, %v1834, -9e+16
    %v1846 = vsel %vm1844, %v1839, -9e+16
    %1847 = vmax.xlane.f32.xlu0 %v1845
    %v1848 = vpop.xlane.xlu0 %1847
    %1849 = vmax.xlane.f32.xlu0 %v1846
    %v1850 = vpop.xlane.xlu0 %1849
    %v1851 = vsub.f32 %v1845, %v1848
    %v1852 = vsub.f32 %v1846, %v1850
    %v1853 = vmul.f32 %v1851, 1.442695
    %v1854 = vpow.pop %v1853
    %v1855 = vmul.f32 %v1852, 1.442695
    %v1856 = vpow.pop %v1855
    %1857 = vadd.xlane.f32.xlu0 %v1854
    %v1858 = vpop.xlane.xlu0 %1857
    %1859 = vadd.xlane.f32.xlu0 %v1856
    %v1860 = vpop.xlane.xlu0 %1859
    %v1861 = vlog2.pop %v1858
    %v1862 = vmul.f32 %v1861, 0.6931472
    %v1863 = vlog2.pop %v1860
    %v1864 = vmul.f32 %v1863, 0.6931472
    %v1865 = vadd.f32 %v1862, %v1848
    %v1866 = vadd.f32 %v1864, %v1850
    %v1867 = vsub.f32 %v1845, %v1865
    %v1868 = vsub.f32 %v1846, %v1866
    %1869 = vst [vmem:[%s6] sm:$0xff] %v1867
    %1870 = vst [vmem:[%s6 + $0x8] sm:$0xff] %v1868
    // Predicated region
    $region26: #{gat_forward.1} parent=1 // pred_check
      _
    $region27: #{gat_forward.1} parent=1 // pred_check_branch
      %1872 = sbr.rel (0) target = $region29
    $region28: #{gat_forward.1} parent=1 // pred_region
      _
    $region29: #{gat_forward.1} parent=1 // pred_fallthru
      _
    // Predicated region
    $region30: #{gat_forward.1} parent=1 // pred_check
      _
    $region31: #{gat_forward.1} parent=1 // pred_check_branch
      %1874 = sbr.rel (0) target = $region33
    $region32: #{gat_forward.1} parent=1 // pred_region
      _
    $region33: #{gat_forward.1} parent=1 // pred_fallthru
      _
    // Predicated region
    $region34: #{gat_forward.1} parent=1 // pred_check
      _
    $region35: #{gat_forward.1} parent=1 // pred_check_branch
      %1876 = sbr.rel (0) target = $region37
    $region36: #{gat_forward.1} parent=1 // pred_region
      %s1878 = ssub.s32 256, 256
      %1879 = vsyncadd [#allocation3], %s1878
      %s1880 = sshll.u32 [#allocation2], 4
      %s1881 = int_to_ptr.vmem [resolvable:$true] %s1880
      %1886 = dma.vmem_to_hbm [thread:$0]  %s1881, 256, %s8, [#allocation3], 128, 128, 8
    $region37: #{gat_forward.1} parent=1 // pred_fallthru
      _
    // Predicated region
    $region38: #{gat_forward.1} parent=1 // pred_check
      _
    $region39: #{gat_forward.1} parent=1 // pred_check_branch
      %1888 = sbr.rel (0) target = $region41
    $region40: #{gat_forward.1} parent=1 // pred_region
      _
    $region41: #{gat_forward.1} parent=1 // pred_fallthru
      _
    // Predicated region
    $region42: #{gat_forward.1} parent=1 // pred_check
      _
    $region43: #{gat_forward.1} parent=1 // pred_check_branch
      %1890 = sbr.rel (0) target = $region45
    $region44: #{gat_forward.1} parent=1 // pred_region
      _
    $region45: #{gat_forward.1} parent=1 // pred_fallthru
      _
    // Predicated region
    $region46: #{gat_forward.1} parent=1 // pred_check
      _
    $region47: #{gat_forward.1} parent=1 // pred_check_branch
      %1892 = sbr.rel (0) target = $region49
    $region48: #{gat_forward.1} parent=1 // pred_region
      %1893 = dma.done [#allocation3], 256
    $region49: #{gat_forward.1} parent=1 // pred_fallthru
      _
    %1894 = vsyncpa [#allocation3], 1

</llo_original>
